<compile_context>
chip_gen: v7x
topology: tpu7x:2x2x1
jax: 0.10.0
libtpu: 0.0.40
codegen_flags: <defaults>
</compile_context>

<pallas_src>
import functools
import math

import jax
import jax.numpy as jnp
from jax.experimental import pallas as pl
from jax.experimental.pallas import tpu as pltpu

# ----------------------------- sizes (scaled-down BERT) ---------------------
B = 4          # batch
S = 128        # sequence length (stands in for 512)
H = 128        # hidden size     (stands in for 768)
OUT = 8        # output_shape of the final Linear head
NH = 4         # attention heads
HD = H // NH   # head dim
NLAYERS = 4    # encoder layers (>= 4 so hidden_states[-4:] exist)
VOCAB = 64

B_TILE = 8            # padded batch tile (8-sublane vreg height)
S_TILE_TARGET = 512   # streamed sequence-tile target (>= ~1 MiB blocks @ real H)
OUT_PAD = 128         # classifier output padded to a full lane width


def _pick_s_tile(s, target=S_TILE_TARGET):
    """Largest divisor of s that is <= target (== s for small toy shapes)."""
    t = min(s, target)
    while s % t:
        t -= 1
    return t


def _make_selector(b_tile, s_tile):
    """(B_TILE, B_TILE*S_TILE) bf16 block-diagonal ones.

    sel @ reshape(h, (B_TILE*S_TILE, H)) == per-batch sequence sum, computed on
    the MXU with f32 accumulation (no f32 temp, no VPU/XLU reduction)."""
    rows = jnp.arange(b_tile, dtype=jnp.int32)[:, None]
    cols = jnp.arange(b_tile * s_tile, dtype=jnp.int32)[None, :]
    return (cols // s_tile == rows).astype(jnp.bfloat16)


# =============================================================================
# Pallas kernel: CustomBertPooling + final Linear (the QA head hot path)
# =============================================================================
def head_kernel(h_ref, cls_ref, sel_ref, w_ref, wf_ref, b_ref, bf_ref,
                out_ref, sum_acc, max_acc, *, seq_len):
    k = pl.program_id(1)                                 # sequence-tile index

    @pl.when(k == 0)
    def _():
        sum_acc[...] = jnp.zeros_like(sum_acc)
        max_acc[...] = jnp.full_like(max_acc, -jnp.inf)

    h_bf = h_ref[...]                                    # (B_TILE, S_TILE, H) bf16
    bt, st, hd = h_bf.shape

    # Sequence sum on the MXU: bf16 selector x flattened bf16 tile, f32 acc.
    h_flat = h_bf.reshape(bt * st, hd)
    sum_acc[...] = sum_acc[...] + jnp.dot(
        sel_ref[...], h_flat, preferred_element_type=jnp.float32)

    # Sequence max directly on the bf16 tile; only the small result is upcast.
    tile_max = jnp.max(h_bf, axis=1)                     # (B_TILE, H) bf16
    max_acc[...] = jnp.maximum(max_acc[...], tile_max.astype(jnp.float32))

    @pl.when(k == pl.num_programs(1) - 1)
    def _():
        cls = cls_ref[...]                               # (4, B_TILE, H) f32
        h9, h10, h11, h12 = cls[0], cls[1], cls[2], cls[3]

        x_avg = sum_acc[...] * (1.0 / seq_len)
        x_max = max_acc[...]

        def mm(x, w):                                    # bf16 MXU, f32 acc
            return jnp.dot(x.astype(jnp.bfloat16), w,
                           preferred_element_type=jnp.float32)

        # x1 = tanh(Linear(h12))
        x1 = jnp.tanh(mm(h12, w_ref[0]) + b_ref[0])

        # x2 = tanh(Linear([x_avg | x_max]))  -- split-weight, no lane concat
        x2 = jnp.tanh(mm(x_avg, w_ref[1]) + mm(x_max, w_ref[2]) + b_ref[1])

        # x3 = tanh(Linear([mean(cls) | max(cls)]))
        mean_pool = (h9 + h10 + h11 + h12) * 0.25
        max_pool = jnp.maximum(jnp.maximum(h9, h10), jnp.maximum(h11, h12))
        x3 = jnp.tanh(mm(mean_pool, w_ref[3]) + mm(max_pool, w_ref[4])
                      + b_ref[2])

        # final classifier Linear(3H -> OUT_PAD), split-weight accumulated
        out = (mm(x1, wf_ref[0]) + mm(x2, wf_ref[1]) + mm(x3, wf_ref[2])
               + bf_ref[...])
        out_ref[...] = out.astype(out_ref.dtype)


def prepack_head(head, out_pad=OUT_PAD):
    """Transpose / split / stack / downcast head weights once (not per call)."""
    hdim = head["w1"].shape[0]
    w1t = head["w1"].T                      # (H, H)
    w2t = head["w2"].T                      # (2H, H)
    w3t = head["w3"].T                      # (2H, H)
    wft = head["wf"].T                      # (3H, OUT)
    out_dim = wft.shape[1]

    w_stack = jnp.stack(
        [w1t, w2t[:hdim], w2t[hdim:], w3t[:hdim], w3t[hdim:]],
        axis=0).astype(jnp.bfloat16)                                 # (5, H, H)
    wf_parts = jnp.stack(
        [wft[:hdim], wft[hdim:2 * hdim], wft[2 * hdim:]], axis=0)    # (3, H, OUT)
    wf_stack = jnp.pad(
        wf_parts, ((0, 0), (0, 0), (0, out_pad - out_dim))
    ).astype(jnp.bfloat16)                                           # (3, H, 128)
    b_stack = jnp.stack(
        [head["b1"], head["b2"], head["b3"]], axis=0)[:, None, :]    # (3, 1, H) f32
    bf = jnp.pad(head["bf"], (0, out_pad - out_dim))[None, :]        # (1, 128) f32
    return {"w_stack": w_stack, "wf_stack": wf_stack,
            "b_stack": b_stack, "bf": bf, "out_dim": out_dim}


def qa_head_pallas(h_last, cls9, cls10, cls11, packed):
    """CustomBertPooling + layer_1 on TPU via a single pallas_call."""
    b, s, hdim = h_last.shape
    out_dim = packed["out_dim"]
    bp = ((b + B_TILE - 1) // B_TILE) * B_TILE
    pad = bp - b
    s_tile = _pick_s_tile(s)
    assert s % s_tile == 0, "sequence tail would be dropped"
    grid_b = bp // B_TILE            # NOTE: >= 2 tiles needed to use both v7x TCs
    grid_k = s // s_tile

    # bf16 streaming input (f32 accumulation inside the kernel), padded batch
    h_bf = jnp.pad(h_last, ((0, pad), (0, 0), (0, 0))).astype(jnp.bfloat16)

    # f32 CLS slab; h12 (= h_last[:,0,:]) is its 4th row -> no in-kernel capture
    cls12 = h_last[:, 0, :]
    cls_stack = jnp.stack([cls9, cls10, cls11, cls12], axis=0)       # (4, B, H)
    cls_stack = jnp.pad(cls_stack, ((0, 0), (0, pad), (0, 0)))

    selector = _make_selector(B_TILE, s_tile)            # (B_TILE, B_TILE*S_TILE)

    h_spec_kwargs = {}
    if grid_k >= 4:
        h_spec_kwargs["pipeline_mode"] = pl.Buffered(3)
    h_spec = pl.BlockSpec((B_TILE, s_tile, hdim), lambda bi, k: (bi, k, 0),
                          **h_spec_kwargs)

    out = pl.pallas_call(
        functools.partial(head_kernel, seq_len=s),
        out_shape=jax.ShapeDtypeStruct((bp, OUT_PAD), jnp.float32),
        grid_spec=pltpu.PrefetchScalarGridSpec(
            num_scalar_prefetch=0,
            grid=(grid_b, grid_k),
            in_specs=[
                h_spec,
                pl.BlockSpec((4, B_TILE, hdim), lambda bi, k: (0, bi, 0)),
                pl.BlockSpec((B_TILE, B_TILE * s_tile), lambda bi, k: (0, 0)),
                pl.BlockSpec((5, hdim, hdim), lambda bi, k: (0, 0, 0)),
                pl.BlockSpec((3, hdim, OUT_PAD), lambda bi, k: (0, 0, 0)),
                pl.BlockSpec((3, 1, hdim), lambda bi, k: (0, 0, 0)),
                pl.BlockSpec((1, OUT_PAD), lambda bi, k: (0, 0)),
            ],
            out_specs=pl.BlockSpec((B_TILE, OUT_PAD), lambda bi, k: (bi, 0)),
            scratch_shapes=[
                pltpu.VMEM((B_TILE, hdim), jnp.float32),   # running seq-sum
                pltpu.VMEM((B_TILE, hdim), jnp.float32),   # running seq-max
            ]),
        compiler_params=pltpu.CompilerParams(
            dimension_semantics=("parallel", "arbitrary"),
            vmem_limit_bytes=32 * 1024 * 1024),
    )(h_bf, cls_stack, selector, packed["w_stack"], packed["wf_stack"],
      packed["b_stack"], packed["bf"])
    return out[:b, :out_dim]


# =============================================================================
# Tiny deterministic BERT-style encoder (plain JAX glue) -> hidden_states list
# =============================================================================
def _layer_norm(x, g, b, eps=1e-12):
    mu = jnp.mean(x, axis=-1, keepdims=True)
    var = jnp.mean((x - mu) ** 2, axis=-1, keepdims=True)
    return (x - mu) / jnp.sqrt(var + eps) * g + b


def _encoder_layer(x, p, mask_bias):
    b, s, h = x.shape
    q = (x @ p["wq"] + p["bq"]).reshape(b, s, NH, HD).transpose(0, 2, 1, 3)
    k = (x @ p["wk"] + p["bk"]).reshape(b, s, NH, HD).transpose(0, 2, 1, 3)
    v = (x @ p["wv"] + p["bv"]).reshape(b, s, NH, HD).transpose(0, 2, 1, 3)
    scores = jnp.einsum("bnqd,bnkd->bnqk", q, k) / math.sqrt(HD) + mask_bias
    attn = jax.nn.softmax(scores, axis=-1)
    ctx = jnp.einsum("bnqk,bnkd->bnqd", attn, v)
    ctx = ctx.transpose(0, 2, 1, 3).reshape(b, s, h)
    x = _layer_norm(x + ctx @ p["wo"] + p["bo"], p["ln1_g"], p["ln1_b"])
    ff = jax.nn.gelu(x @ p["wi"] + p["bi"]) @ p["wo2"] + p["bo2"]
    return _layer_norm(x + ff, p["ln2_g"], p["ln2_b"])


def tiny_bert(params, input_ids, attention_mask, token_type_ids):
    emb = (params["tok_emb"][input_ids]
           + params["pos_emb"][None, :input_ids.shape[1], :]
           + params["type_emb"][token_type_ids])
    x = _layer_norm(emb, params["emb_ln_g"], params["emb_ln_b"])
    mask_bias = (1.0 - attention_mask.astype(jnp.float32))[:, None, None, :] * -1e9
    hidden_states = [x]
    for lp in params["layers"]:
        x = _encoder_layer(x, lp, mask_bias)
        hidden_states.append(x)
    return hidden_states


# =============================================================================
# Parameter init (deterministic) and full forward
# =============================================================================
def init_params(key):
    def nrm(k, shape, scale=0.02):
        return scale * jax.random.normal(k, shape, dtype=jnp.float32)

    keys = jax.random.split(key, 8 + NLAYERS)
    params = {
        "tok_emb": nrm(keys[0], (VOCAB, H)),
        "pos_emb": nrm(keys[1], (S, H)),
        "type_emb": nrm(keys[2], (2, H)),
        "emb_ln_g": jnp.ones((H,), jnp.float32),
        "emb_ln_b": jnp.zeros((H,), jnp.float32),
        "layers": [],
    }
    for li in range(NLAYERS):
        lk = jax.random.split(keys[3 + li], 8)
        params["layers"].append({
            "wq": nrm(lk[0], (H, H)), "bq": jnp.zeros((H,), jnp.float32),
            "wk": nrm(lk[1], (H, H)), "bk": jnp.zeros((H,), jnp.float32),
            "wv": nrm(lk[2], (H, H)), "bv": jnp.zeros((H,), jnp.float32),
            "wo": nrm(lk[3], (H, H)), "bo": jnp.zeros((H,), jnp.float32),
            "wi": nrm(lk[4], (H, 4 * H)), "bi": jnp.zeros((4 * H,), jnp.float32),
            "wo2": nrm(lk[5], (4 * H, H)), "bo2": jnp.zeros((H,), jnp.float32),
            "ln1_g": jnp.ones((H,), jnp.float32), "ln1_b": jnp.zeros((H,), jnp.float32),
            "ln2_g": jnp.ones((H,), jnp.float32), "ln2_b": jnp.zeros((H,), jnp.float32),
        })
    hk = jax.random.split(keys[3 + NLAYERS], 8)
    # nonzero biases so bias-broadcast bugs are caught by the correctness check
    head = {
        "w1": nrm(hk[0], (H, H)),       "b1": nrm(hk[4], (H,), 0.1),
        "w2": nrm(hk[1], (H, 2 * H)),   "b2": nrm(hk[5], (H,), 0.1),
        "w3": nrm(hk[2], (H, 2 * H)),   "b3": nrm(hk[6], (H,), 0.1),
        "wf": nrm(hk[3], (OUT, 3 * H)), "bf": nrm(hk[7], (OUT,), 0.1),
    }
    return params, head


def bert_on_qa2_forward(params, packed_head, input_ids, attention_mask,
                        token_type_ids):
    hidden_states = tiny_bert(params, input_ids, attention_mask, token_type_ids)
    h_last = hidden_states[-1]                     # (B, S, H)
    cls11 = hidden_states[-2][:, 0, :]             # (B, H)
    cls10 = hidden_states[-3][:, 0, :]
    cls9 = hidden_states[-4][:, 0, :]
    return qa_head_pallas(h_last, cls9, cls10, cls11, packed_head)


# Pure-JAX f32 reference of the Pallas head (for correctness check)
def head_reference(h_last, cls9, cls10, cls11, hp):
    h12 = h_last[:, 0, :]
    x1 = jnp.tanh(h12 @ hp["w1"].T + hp["b1"])
    x2 = jnp.tanh(jnp.concatenate(
        [jnp.mean(h_last, axis=1), jnp.max(h_last, axis=1)], axis=1) @ hp["w2"].T
        + hp["b2"])
    all_h = jnp.stack([cls9, cls10, cls11, h12], axis=1)   # (B, 4, H)
    x3 = jnp.tanh(jnp.concatenate(
        [jnp.mean(all_h, axis=1), jnp.max(all_h, axis=1)], axis=1) @ hp["w3"].T
        + hp["b3"])
    feat = jnp.concatenate([x1, x2, x3], axis=1)
    return feat @ hp["wf"].T + hp["bf"]


if __name__ == "__main__":
    key = jax.random.PRNGKey(0)
    pkey, dkey = jax.random.split(key)
    params, head_params = init_params(pkey)
    packed_head = prepack_head(head_params)        # one-time transpose/split/bf16

    input_ids = jax.random.randint(dkey, (B, S), 0, VOCAB, dtype=jnp.int32)
    attention_mask = jnp.ones((B, S), dtype=jnp.int32)
    token_type_ids = jnp.zeros((B, S), dtype=jnp.int32)

    out = bert_on_qa2_forward(params, packed_head, input_ids, attention_mask,
                              token_type_ids)
    out = jax.block_until_ready(out)

    # correctness check of the Pallas head against a pure-JAX f32 reference
    # (kernel streams h_last and holds weights in bf16 -> ~1e-2 tolerance)
    hidden_states = tiny_bert(params, input_ids, attention_mask, token_type_ids)
    ref = head_reference(hidden_states[-1], hidden_states[-4][:, 0, :],
                         hidden_states[-3][:, 0, :], hidden_states[-2][:, 0, :],
                         head_params)
    assert out.shape == (B, OUT)
    assert jnp.allclose(out, ref, rtol=2e-2, atol=2e-2), "mismatch vs reference"

    print("KERNEL_OK")
</pallas_src>

<mosaic_0001>
module attributes {stable_mosaic.version = 11 : i64} {
  func.func @head_kernel(%arg0: i32, %arg1: i32, %arg2: memref<8x128x128xbf16, #tpu.memory_space<vmem>>, %arg3: memref<4x8x128xf32, #tpu.memory_space<vmem>>, %arg4: memref<8x1024xbf16, #tpu.memory_space<vmem>>, %arg5: memref<5x128x128xbf16, #tpu.memory_space<vmem>>, %arg6: memref<3x128x128xbf16, #tpu.memory_space<vmem>>, %arg7: memref<3x1x128xf32, #tpu.memory_space<vmem>>, %arg8: memref<1x128xf32, #tpu.memory_space<vmem>>, %arg9: memref<8x128xf32, #tpu.memory_space<vmem>>, %arg10: memref<8x128xf32, #tpu.memory_space<vmem>>, %arg11: memref<8x128xf32, #tpu.memory_space<vmem>>) attributes {dimension_semantics = [#tpu.dimension_semantics<parallel>, #tpu.dimension_semantics<arbitrary>], iteration_bounds = array<i64: 1, 1>, scalar_prefetch = 0 : i64, scratch_operands = 2 : i64, tpu.core_type = #tpu.core_type<tc>, window_params = [{transform_indices = @transform_0, window_bounds = array<i64: 8, 128, 128>}, {transform_indices = @transform_1, window_bounds = array<i64: 4, 8, 128>}, {pipeline_mode = #tpu.pipeline_mode<synchronous>, transform_indices = @transform_2, window_bounds = array<i64: 8, 1024>}, {pipeline_mode = #tpu.pipeline_mode<synchronous>, transform_indices = @transform_3, window_bounds = array<i64: 5, 128, 128>}, {pipeline_mode = #tpu.pipeline_mode<synchronous>, transform_indices = @transform_4, window_bounds = array<i64: 3, 128, 128>}, {pipeline_mode = #tpu.pipeline_mode<synchronous>, transform_indices = @transform_5, window_bounds = array<i64: 3, 1, 128>}, {pipeline_mode = #tpu.pipeline_mode<synchronous>, transform_indices = @transform_6, window_bounds = array<i64: 1, 128>}, {transform_indices = @transform_7, window_bounds = array<i64: 8, 128>}]} {
    %c0_i32 = arith.constant 0 : i32
    %0 = arith.cmpi eq, %arg1, %c0_i32 : i32
    %1 = arith.extui %0 : i1 to i32
    %c0_i32_0 = arith.constant 0 : i32
    %2 = arith.cmpi ne, %1, %c0_i32_0 : i32
    scf.if %2 {
      %cst_16 = arith.constant 0.000000e+00 : f32
      %18 = vector.broadcast %cst_16 : f32 to vector<8x128xf32>
      %c0_17 = arith.constant 0 : index
      %c0_18 = arith.constant 0 : index
      %19 = vector.load %arg10[%c0_17, %c0_18] : memref<8x128xf32, #tpu.memory_space<vmem>>, vector<8x128xf32>
      tpu.vector_store %arg10[%c0_17, %c0_18], %18 {strides = array<i32>} : memref<8x128xf32, #tpu.memory_space<vmem>>, vector<8x128xf32>,
      %cst_19 = arith.constant 0xFF800000 : f32
      %20 = vector.broadcast %cst_19 : f32 to vector<8x128xf32>
      %c0_20 = arith.constant 0 : index
      %c0_21 = arith.constant 0 : index
      %21 = vector.load %arg11[%c0_20, %c0_21] : memref<8x128xf32, #tpu.memory_space<vmem>>, vector<8x128xf32>
      tpu.vector_store %arg11[%c0_20, %c0_21], %20 {strides = array<i32>} : memref<8x128xf32, #tpu.memory_space<vmem>>, vector<8x128xf32>,
    } else {
    }
    %c0 = arith.constant 0 : index
    %c0_1 = arith.constant 0 : index
    %c0_2 = arith.constant 0 : index
    %3 = vector.load %arg2[%c0, %c0_1, %c0_2] : memref<8x128x128xbf16, #tpu.memory_space<vmem>>, vector<8x128x128xbf16>
    %4 = vector.shape_cast %3 : vector<8x128x128xbf16> to vector<1024x128xbf16>
    %c0_3 = arith.constant 0 : index
    %c0_4 = arith.constant 0 : index
    %5 = vector.load %arg10[%c0_3, %c0_4] : memref<8x128xf32, #tpu.memory_space<vmem>>, vector<8x128xf32>
    %c0_5 = arith.constant 0 : index
    %c0_6 = arith.constant 0 : index
    %6 = vector.load %arg4[%c0_5, %c0_6] : memref<8x1024xbf16, #tpu.memory_space<vmem>>, vector<8x1024xbf16>
    %cst = arith.constant dense<0.000000e+00> : vector<8x128xf32>
    %7 = tpu.matmul %6, %4, %cst {dimension_numbers = #tpu.dot_dimension_numbers<[1], [0], [0], [1], [0, 0, 1, 1], [], []>} : vector<8x1024xbf16>, vector<1024x128xbf16>, vector<8x128xf32> -> vector<8x128xf32>
    %8 = arith.addf %5, %7 : vector<8x128xf32>
    %c0_7 = arith.constant 0 : index
    %c0_8 = arith.constant 0 : index
    %9 = vector.load %arg10[%c0_7, %c0_8] : memref<8x128xf32, #tpu.memory_space<vmem>>, vector<8x128xf32>
    tpu.vector_store %arg10[%c0_7, %c0_8], %8 {strides = array<i32>} : memref<8x128xf32, #tpu.memory_space<vmem>>, vector<8x128xf32>,
    %cst_9 = arith.constant dense<0xFF80> : vector<8x128xbf16>
    %10 = vector.multi_reduction <maximumf>, %3, %cst_9 [1] : vector<8x128x128xbf16> to vector<8x128xbf16>
    %c0_10 = arith.constant 0 : index
    %c0_11 = arith.constant 0 : index
    %11 = vector.load %arg11[%c0_10, %c0_11] : memref<8x128xf32, #tpu.memory_space<vmem>>, vector<8x128xf32>
    %12 = arith.extf %10 : vector<8x128xbf16> to vector<8x128xf32>
    %13 = arith.maximumf %11, %12 : vector<8x128xf32>
    %c0_12 = arith.constant 0 : index
    %c0_13 = arith.constant 0 : index
    %14 = vector.load %arg11[%c0_12, %c0_13] : memref<8x128xf32, #tpu.memory_space<vmem>>, vector<8x128xf32>
    tpu.vector_store %arg11[%c0_12, %c0_13], %13 {strides = array<i32>} : memref<8x128xf32, #tpu.memory_space<vmem>>, vector<8x128xf32>,
    %c0_i32_14 = arith.constant 0 : i32
    %15 = arith.cmpi eq, %arg1, %c0_i32_14 : i32
    %16 = arith.extui %15 : i1 to i32
    %c0_i32_15 = arith.constant 0 : i32
    %17 = arith.cmpi ne, %16, %c0_i32_15 : i32
    scf.if %17 {
      %c0_16 = arith.constant 0 : index
      %c0_17 = arith.constant 0 : index
      %c0_18 = arith.constant 0 : index
      %18 = vector.load %arg3[%c0_16, %c0_17, %c0_18] : memref<4x8x128xf32, #tpu.memory_space<vmem>>, vector<4x8x128xf32>
      %19 = vector.extract_strided_slice %18 {offsets = [0, 0, 0], sizes = [1, 8, 128], strides = [1, 1, 1]} : vector<4x8x128xf32> to vector<1x8x128xf32>
      %20 = vector.shape_cast %19 : vector<1x8x128xf32> to vector<8x128xf32>
      %21 = vector.extract_strided_slice %18 {offsets = [1, 0, 0], sizes = [1, 8, 128], strides = [1, 1, 1]} : vector<4x8x128xf32> to vector<1x8x128xf32>
      %22 = vector.shape_cast %21 : vector<1x8x128xf32> to vector<8x128xf32>
      %23 = vector.extract_strided_slice %18 {offsets = [2, 0, 0], sizes = [1, 8, 128], strides = [1, 1, 1]} : vector<4x8x128xf32> to vector<1x8x128xf32>
      %24 = vector.shape_cast %23 : vector<1x8x128xf32> to vector<8x128xf32>
      %25 = vector.extract_strided_slice %18 {offsets = [3, 0, 0], sizes = [1, 8, 128], strides = [1, 1, 1]} : vector<4x8x128xf32> to vector<1x8x128xf32>
      %26 = vector.shape_cast %25 : vector<1x8x128xf32> to vector<8x128xf32>
      %c0_19 = arith.constant 0 : index
      %c0_20 = arith.constant 0 : index
      %27 = vector.load %arg10[%c0_19, %c0_20] : memref<8x128xf32, #tpu.memory_space<vmem>>, vector<8x128xf32>
      %cst_21 = arith.constant 7.812500e-03 : f32
      %28 = vector.broadcast %cst_21 : f32 to vector<8x128xf32>
      %29 = arith.mulf %27, %28 : vector<8x128xf32>
      %c0_22 = arith.constant 0 : index
      %c0_23 = arith.constant 0 : index
      %30 = vector.load %arg11[%c0_22, %c0_23] : memref<8x128xf32, #tpu.memory_space<vmem>>, vector<8x128xf32>
      %c0_24 = arith.constant 0 : index
      %c0_25 = arith.constant 0 : index
      %c0_26 = arith.constant 0 : index
      %31 = vector.load %arg5[%c0_24, %c0_25, %c0_26] : memref<5x128x128xbf16, #tpu.memory_space<vmem>>, vector<1x128x128xbf16>
      %32 = vector.shape_cast %31 : vector<1x128x128xbf16> to vector<128x128xbf16>
      %33 = arith.truncf %26 : vector<8x128xf32> to vector<8x128xbf16>
      %cst_27 = arith.constant dense<0.000000e+00> : vector<8x128xf32>
      %34 = tpu.matmul %33, %32, %cst_27 {dimension_numbers = #tpu.dot_dimension_numbers<[1], [0], [0], [1], [0, 0, 1, 1], [], []>} : vector<8x128xbf16>, vector<128x128xbf16>, vector<8x128xf32> -> vector<8x128xf32>
      %c0_28 = arith.constant 0 : index
      %c0_29 = arith.constant 0 : index
      %c0_30 = arith.constant 0 : index
      %35 = vector.load %arg7[%c0_28, %c0_29, %c0_30] : memref<3x1x128xf32, #tpu.memory_space<vmem>>, vector<1x1x128xf32>
      %36 = vector.shape_cast %35 : vector<1x1x128xf32> to vector<1x128xf32>
      %37 = vector.broadcast %36 : vector<1x128xf32> to vector<8x128xf32>
      %38 = arith.addf %34, %37 : vector<8x128xf32>
      %39 = math.tanh %38 : vector<8x128xf32>
      %c1 = arith.constant 1 : index
      %c0_31 = arith.constant 0 : index
      %c0_32 = arith.constant 0 : index
      %40 = vector.load %arg5[%c1, %c0_31, %c0_32] : memref<5x128x128xbf16, #tpu.memory_space<vmem>>, vector<1x128x128xbf16>
      %41 = vector.shape_cast %40 : vector<1x128x128xbf16> to vector<128x128xbf16>
      %42 = arith.truncf %29 : vector<8x128xf32> to vector<8x128xbf16>
      %cst_33 = arith.constant dense<0.000000e+00> : vector<8x128xf32>
      %43 = tpu.matmul %42, %41, %cst_33 {dimension_numbers = #tpu.dot_dimension_numbers<[1], [0], [0], [1], [0, 0, 1, 1], [], []>} : vector<8x128xbf16>, vector<128x128xbf16>, vector<8x128xf32> -> vector<8x128xf32>
      %c2 = arith.constant 2 : index
      %c0_34 = arith.constant 0 : index
      %c0_35 = arith.constant 0 : index
      %44 = vector.load %arg5[%c2, %c0_34, %c0_35] : memref<5x128x128xbf16, #tpu.memory_space<vmem>>, vector<1x128x128xbf16>
      %45 = vector.shape_cast %44 : vector<1x128x128xbf16> to vector<128x128xbf16>
      %46 = arith.truncf %30 : vector<8x128xf32> to vector<8x128xbf16>
      %cst_36 = arith.constant dense<0.000000e+00> : vector<8x128xf32>
      %47 = tpu.matmul %46, %45, %cst_36 {dimension_numbers = #tpu.dot_dimension_numbers<[1], [0], [0], [1], [0, 0, 1, 1], [], []>} : vector<8x128xbf16>, vector<128x128xbf16>, vector<8x128xf32> -> vector<8x128xf32>
      %48 = arith.addf %43, %47 : vector<8x128xf32>
      %c1_37 = arith.constant 1 : index
      %c0_38 = arith.constant 0 : index
      %c0_39 = arith.constant 0 : index
      %49 = vector.load %arg7[%c1_37, %c0_38, %c0_39] : memref<3x1x128xf32, #tpu.memory_space<vmem>>, vector<1x1x128xf32>
      %50 = vector.shape_cast %49 : vector<1x1x128xf32> to vector<1x128xf32>
      %51 = vector.broadcast %50 : vector<1x128xf32> to vector<8x128xf32>
      %52 = arith.addf %48, %51 : vector<8x128xf32>
      %53 = math.tanh %52 : vector<8x128xf32>
      %54 = arith.addf %20, %22 : vector<8x128xf32>
      %55 = arith.addf %54, %24 : vector<8x128xf32>
      %56 = arith.addf %55, %26 : vector<8x128xf32>
      %cst_40 = arith.constant 2.500000e-01 : f32
      %57 = vector.broadcast %cst_40 : f32 to vector<8x128xf32>
      %58 = arith.mulf %56, %57 : vector<8x128xf32>
      %59 = arith.maximumf %20, %22 : vector<8x128xf32>
      %60 = arith.maximumf %24, %26 : vector<8x128xf32>
      %61 = arith.maximumf %59, %60 : vector<8x128xf32>
      %c3 = arith.constant 3 : index
      %c0_41 = arith.constant 0 : index
      %c0_42 = arith.constant 0 : index
      %62 = vector.load %arg5[%c3, %c0_41, %c0_42] : memref<5x128x128xbf16, #tpu.memory_space<vmem>>, vector<1x128x128xbf16>
      %63 = vector.shape_cast %62 : vector<1x128x128xbf16> to vector<128x128xbf16>
      %64 = arith.truncf %58 : vector<8x128xf32> to vector<8x128xbf16>
      %cst_43 = arith.constant dense<0.000000e+00> : vector<8x128xf32>
      %65 = tpu.matmul %64, %63, %cst_43 {dimension_numbers = #tpu.dot_dimension_numbers<[1], [0], [0], [1], [0, 0, 1, 1], [], []>} : vector<8x128xbf16>, vector<128x128xbf16>, vector<8x128xf32> -> vector<8x128xf32>
      %c4 = arith.constant 4 : index
      %c0_44 = arith.constant 0 : index
      %c0_45 = arith.constant 0 : index
      %66 = vector.load %arg5[%c4, %c0_44, %c0_45] : memref<5x128x128xbf16, #tpu.memory_space<vmem>>, vector<1x128x128xbf16>
      %67 = vector.shape_cast %66 : vector<1x128x128xbf16> to vector<128x128xbf16>
      %68 = arith.truncf %61 : vector<8x128xf32> to vector<8x128xbf16>
      %cst_46 = arith.constant dense<0.000000e+00> : vector<8x128xf32>
      %69 = tpu.matmul %68, %67, %cst_46 {dimension_numbers = #tpu.dot_dimension_numbers<[1], [0], [0], [1], [0, 0, 1, 1], [], []>} : vector<8x128xbf16>, vector<128x128xbf16>, vector<8x128xf32> -> vector<8x128xf32>
      %70 = arith.addf %65, %69 : vector<8x128xf32>
      %c2_47 = arith.constant 2 : index
      %c0_48 = arith.constant 0 : index
      %c0_49 = arith.constant 0 : index
      %71 = vector.load %arg7[%c2_47, %c0_48, %c0_49] : memref<3x1x128xf32, #tpu.memory_space<vmem>>, vector<1x1x128xf32>
      %72 = vector.shape_cast %71 : vector<1x1x128xf32> to vector<1x128xf32>
      %73 = vector.broadcast %72 : vector<1x128xf32> to vector<8x128xf32>
      %74 = arith.addf %70, %73 : vector<8x128xf32>
      %75 = math.tanh %74 : vector<8x128xf32>
      %c0_50 = arith.constant 0 : index
      %c0_51 = arith.constant 0 : index
      %c0_52 = arith.constant 0 : index
      %76 = vector.load %arg6[%c0_50, %c0_51, %c0_52] : memref<3x128x128xbf16, #tpu.memory_space<vmem>>, vector<1x128x128xbf16>
      %77 = vector.shape_cast %76 : vector<1x128x128xbf16> to vector<128x128xbf16>
      %78 = arith.truncf %39 : vector<8x128xf32> to vector<8x128xbf16>
      %cst_53 = arith.constant dense<0.000000e+00> : vector<8x128xf32>
      %79 = tpu.matmul %78, %77, %cst_53 {dimension_numbers = #tpu.dot_dimension_numbers<[1], [0], [0], [1], [0, 0, 1, 1], [], []>} : vector<8x128xbf16>, vector<128x128xbf16>, vector<8x128xf32> -> vector<8x128xf32>
      %c1_54 = arith.constant 1 : index
      %c0_55 = arith.constant 0 : index
      %c0_56 = arith.constant 0 : index
      %80 = vector.load %arg6[%c1_54, %c0_55, %c0_56] : memref<3x128x128xbf16, #tpu.memory_space<vmem>>, vector<1x128x128xbf16>
      %81 = vector.shape_cast %80 : vector<1x128x128xbf16> to vector<128x128xbf16>
      %82 = arith.truncf %53 : vector<8x128xf32> to vector<8x128xbf16>
      %cst_57 = arith.constant dense<0.000000e+00> : vector<8x128xf32>
      %83 = tpu.matmul %82, %81, %cst_57 {dimension_numbers = #tpu.dot_dimension_numbers<[1], [0], [0], [1], [0, 0, 1, 1], [], []>} : vector<8x128xbf16>, vector<128x128xbf16>, vector<8x128xf32> -> vector<8x128xf32>
      %84 = arith.addf %79, %83 : vector<8x128xf32>
      %c2_58 = arith.constant 2 : index
      %c0_59 = arith.constant 0 : index
      %c0_60 = arith.constant 0 : index
      %85 = vector.load %arg6[%c2_58, %c0_59, %c0_60] : memref<3x128x128xbf16, #tpu.memory_space<vmem>>, vector<1x128x128xbf16>
      %86 = vector.shape_cast %85 : vector<1x128x128xbf16> to vector<128x128xbf16>
      %87 = arith.truncf %75 : vector<8x128xf32> to vector<8x128xbf16>
      %cst_61 = arith.constant dense<0.000000e+00> : vector<8x128xf32>
      %88 = tpu.matmul %87, %86, %cst_61 {dimension_numbers = #tpu.dot_dimension_numbers<[1], [0], [0], [1], [0, 0, 1, 1], [], []>} : vector<8x128xbf16>, vector<128x128xbf16>, vector<8x128xf32> -> vector<8x128xf32>
      %89 = arith.addf %84, %88 : vector<8x128xf32>
      %c0_62 = arith.constant 0 : index
      %c0_63 = arith.constant 0 : index
      %90 = vector.load %arg8[%c0_62, %c0_63] : memref<1x128xf32, #tpu.memory_space<vmem>>, vector<1x128xf32>
      %91 = vector.broadcast %90 : vector<1x128xf32> to vector<8x128xf32>
      %92 = arith.addf %89, %91 : vector<8x128xf32>
      %c0_64 = arith.constant 0 : index
      %c0_65 = arith.constant 0 : index
      %93 = vector.load %arg9[%c0_64, %c0_65] : memref<8x128xf32, #tpu.memory_space<vmem>>, vector<8x128xf32>
      tpu.vector_store %arg9[%c0_64, %c0_65], %92 {strides = array<i32>} : memref<8x128xf32, #tpu.memory_space<vmem>>, vector<8x128xf32>,
    } else {
    }
    return
  }
  func.func @transform_0(%arg0: i32, %arg1: i32) -> (i32, i32, i32) {
    %c0_i32 = arith.constant 0 : i32
    %c0_i32_0 = arith.constant 0 : i32
    return %arg0, %arg1, %c0_i32 : i32, i32, i32
  }
  func.func @transform_1(%arg0: i32, %arg1: i32) -> (i32, i32, i32) {
    %c0_i32 = arith.constant 0 : i32
    %c0_i32_0 = arith.constant 0 : i32
    %c0_i32_1 = arith.constant 0 : i32
    return %c0_i32, %arg0, %c0_i32_0 : i32, i32, i32
  }
  func.func @transform_2(%arg0: i32, %arg1: i32) -> (i32, i32) {
    %c0_i32 = arith.constant 0 : i32
    %c0_i32_0 = arith.constant 0 : i32
    %c0_i32_1 = arith.constant 0 : i32
    return %c0_i32, %c0_i32_0 : i32, i32
  }
  func.func @transform_3(%arg0: i32, %arg1: i32) -> (i32, i32, i32) {
    %c0_i32 = arith.constant 0 : i32
    %c0_i32_0 = arith.constant 0 : i32
    %c0_i32_1 = arith.constant 0 : i32
    %c0_i32_2 = arith.constant 0 : i32
    return %c0_i32, %c0_i32_0, %c0_i32_1 : i32, i32, i32
  }
  func.func @transform_4(%arg0: i32, %arg1: i32) -> (i32, i32, i32) {
    %c0_i32 = arith.constant 0 : i32
    %c0_i32_0 = arith.constant 0 : i32
    %c0_i32_1 = arith.constant 0 : i32
    %c0_i32_2 = arith.constant 0 : i32
    return %c0_i32, %c0_i32_0, %c0_i32_1 : i32, i32, i32
  }
  func.func @transform_5(%arg0: i32, %arg1: i32) -> (i32, i32, i32) {
    %c0_i32 = arith.constant 0 : i32
    %c0_i32_0 = arith.constant 0 : i32
    %c0_i32_1 = arith.constant 0 : i32
    %c0_i32_2 = arith.constant 0 : i32
    return %c0_i32, %c0_i32_0, %c0_i32_1 : i32, i32, i32
  }
  func.func @transform_6(%arg0: i32, %arg1: i32) -> (i32, i32) {
    %c0_i32 = arith.constant 0 : i32
    %c0_i32_0 = arith.constant 0 : i32
    %c0_i32_1 = arith.constant 0 : i32
    return %c0_i32, %c0_i32_0 : i32, i32
  }
  func.func @transform_7(%arg0: i32, %arg1: i32) -> (i32, i32) {
    %c0_i32 = arith.constant 0 : i32
    %c0_i32_0 = arith.constant 0 : i32
    return %arg0, %c0_i32 : i32, i32
  }
}

</mosaic_0001>

<llo_original>
// kernel: tpu_custom_call.1
$region0: #{tpu_custom_call.1}
  #allocation0 [shape = 'u32[]', space=smem, size = 0x4, offset = 0x4, fixed_abs, tag = 'smem constant byte address 0x4 - core index']
  #allocation1 [shape = 'u32[144,128]{1,0:T(1,128)}', space=vmem, size = 0x12000, scoped, tag = 'internal scratch']
  #allocation2 [shape = 'f32[8,128]{1,0:T(8,128)}', space=vmem, size = 0x1000, scoped, tag = 'scratch operand']
  #allocation3 [shape = 'f32[8,128]{1,0:T(8,128)}', space=vmem, size = 0x1000, scoped, tag = 'scratch operand']
  %s0 = inlined_call_operand.hbm [shape: bf16[8,128,128], index: 0, kind: input, shape index: {}]
  %s1 = inlined_call_operand.hbm [shape: f32[4,8,128], index: 1, kind: input, shape index: {}]
  %s2 = inlined_call_operand.hbm [shape: bf16[8,1024], index: 2, kind: input, shape index: {}]
  %s3 = inlined_call_operand.hbm [shape: bf16[5,128,128], index: 3, kind: input, shape index: {}]
  %s4 = inlined_call_operand.hbm [shape: bf16[3,128,128], index: 4, kind: input, shape index: {}]
  %s5 = inlined_call_operand.vmem [shape: f32[3,1,128], index: 5, kind: input, shape index: {}]
  %s6 = inlined_call_operand.vmem [shape: f32[1,128], index: 6, kind: input, shape index: {}]
  %s7 = inlined_call_operand.hbm [shape: f32[8,128], index: 7, kind: output, shape index: {}]
  %s8 = sld [smem:[#allocation0]]
  $region66: #{tpu_custom_call.1} parent=0
    _
  %s10 = ssub.s32 1, %s8
  %s11 = scalar_select 0, %s10, %s8
  $region1: #{tpu_custom_call.1} parent=0
    #allocation4 [shape = 'u8[262144]{0}', space=vmem, size = 0x40000, scoped, tag = 'input window, operand 0, single buffered']
    #allocation5 [shape = 's32[1]{0}', space=sflag, size = 0x4, scoped, tag = 'scoped memory for tpu_custom_call.1']
    #allocation6 [shape = 's32[1]{0}', space=sflag, size = 0x4, scoped, tag = 'scoped memory for tpu_custom_call.1']
    #allocation7 [shape = 'u8[16384]{0}', space=vmem, size = 0x4000, scoped, tag = 'input window, operand 1, single buffered']
    #allocation8 [shape = 's32[1]{0}', space=sflag, size = 0x4, scoped, tag = 'scoped memory for tpu_custom_call.1']
    #allocation9 [shape = 'u8[16384]{0}', space=vmem, size = 0x4000, scoped, tag = 'input window, operand 2, single buffered']
    #allocation10 [shape = 'u8[163840]{0}', space=vmem, size = 0x28000, scoped, tag = 'input window, operand 3, single buffered']
    #allocation11 [shape = 's32[1]{0}', space=sflag, size = 0x4, scoped, tag = 'scoped memory for tpu_custom_call.1']
    #allocation12 [shape = 'u8[98304]{0}', space=vmem, size = 0x18000, scoped, tag = 'input window, operand 4, single buffered']
    #allocation13 [shape = 'u8[4096]{0}', space=vmem, size = 0x1000, scoped, tag = 'output window, operand 0, single buffered']
    %12 = vsyncpa [#allocation5], 0
    %13 = vsyncpa [#allocation8], 0
    %14 = vsyncpa [#allocation11], 0
    %15 = vsyncpa [#allocation6], 0
    // Predicated region
    $region2: #{tpu_custom_call.1} parent=1 // pred_check
      _
    $region3: #{tpu_custom_call.1} parent=1 // pred_check_branch
      %17 = sbr.rel (0) target = $region5
    $region4: #{tpu_custom_call.1} parent=1 // pred_region
      %s19 = ssub.s32 8192, 8192
      %20 = vsyncadd [#allocation5], %s19
      %s21 = sshll.u32 [#allocation4], 4
      %s22 = int_to_ptr.vmem [resolvable:$true] %s21
      %27 = dma.hbm_to_vmem [thread:$0]  %s0, 8192, %s22, [#allocation5], 64, 64, 4
    $region5: #{tpu_custom_call.1} parent=1 // pred_fallthru
      _
    // Predicated region
    $region6: #{tpu_custom_call.1} parent=1 // pred_check
      _
    $region7: #{tpu_custom_call.1} parent=1 // pred_check_branch
      %29 = sbr.rel (0) target = $region9
    $region8: #{tpu_custom_call.1} parent=1 // pred_region
      %s31 = ssub.s32 512, 512
      %32 = vsyncadd [#allocation8], %s31
      %s33 = sshll.u32 [#allocation7], 4
      %s34 = int_to_ptr.vmem [resolvable:$true] %s33
      %39 = dma.hbm_to_vmem [thread:$0]  %s1, 512, %s34, [#allocation8], 128, 128, 8
    $region9: #{tpu_custom_call.1} parent=1 // pred_fallthru
      _
    // Predicated region
    $region10: #{tpu_custom_call.1} parent=1 // pred_check
      _
    $region11: #{tpu_custom_call.1} parent=1 // pred_check_branch
      %41 = sbr.rel (0) target = $region13
    $region12: #{tpu_custom_call.1} parent=1 // pred_region
      %s43 = ssub.s32 512, 512
      %44 = vsyncadd [#allocation8], %s43
      %s46 = sshll.u32 [#allocation9], 4
      %s47 = int_to_ptr.vmem [resolvable:$true] %s46
      %49 = dma.hbm_to_vmem [thread:$0]  %s2, 512, %s47, [#allocation8]
    $region13: #{tpu_custom_call.1} parent=1 // pred_fallthru
      _
    // Predicated region
    $region14: #{tpu_custom_call.1} parent=1 // pred_check
      _
    $region15: #{tpu_custom_call.1} parent=1 // pred_check_branch
      %51 = sbr.rel (0) target = $region17
    $region16: #{tpu_custom_call.1} parent=1 // pred_region
      %s53 = ssub.s32 5120, 5120
      %54 = vsyncadd [#allocation11], %s53
      %s55 = sshll.u32 [#allocation10], 4
      %s56 = int_to_ptr.vmem [resolvable:$true] %s55
      %61 = dma.hbm_to_vmem [thread:$0]  %s3, 5120, %s56, [#allocation11], 64, 64, 4
    $region17: #{tpu_custom_call.1} parent=1 // pred_fallthru
      _
    // Predicated region
    $region18: #{tpu_custom_call.1} parent=1 // pred_check
      _
    $region19: #{tpu_custom_call.1} parent=1 // pred_check_branch
      %63 = sbr.rel (0) target = $region21
    $region20: #{tpu_custom_call.1} parent=1 // pred_region
      %s65 = ssub.s32 3072, 3072
      %66 = vsyncadd [#allocation11], %s65
      %s67 = sshll.u32 [#allocation12], 4
      %s68 = int_to_ptr.vmem [resolvable:$true] %s67
      %73 = dma.hbm_to_vmem [thread:$0]  %s4, 3072, %s68, [#allocation11], 64, 64, 4
    $region21: #{tpu_custom_call.1} parent=1 // pred_fallthru
      _
    // Predicated region
    $region22: #{tpu_custom_call.1} parent=1 // pred_check
      _
    $region23: #{tpu_custom_call.1} parent=1 // pred_check_branch
      %75 = sbr.rel (0) target = $region25
    $region24: #{tpu_custom_call.1} parent=1 // pred_region
      _
    $region25: #{tpu_custom_call.1} parent=1 // pred_fallthru
      _
    // Predicated region
    $region26: #{tpu_custom_call.1} parent=1 // pred_check
      _
    $region27: #{tpu_custom_call.1} parent=1 // pred_check_branch
      %77 = sbr.rel (0) target = $region29
    $region28: #{tpu_custom_call.1} parent=1 // pred_region
      _
    $region29: #{tpu_custom_call.1} parent=1 // pred_fallthru
      _
    // Predicated region
    $region30: #{tpu_custom_call.1} parent=1 // pred_check
      _
    $region31: #{tpu_custom_call.1} parent=1 // pred_check_branch
      %79 = sbr.rel (0) target = $region33
    $region32: #{tpu_custom_call.1} parent=1 // pred_region
      %80 = dma.done [#allocation5], 8192
    $region33: #{tpu_custom_call.1} parent=1 // pred_fallthru
      _
    // Predicated region
    $region34: #{tpu_custom_call.1} parent=1 // pred_check
      _
    $region35: #{tpu_custom_call.1} parent=1 // pred_check_branch
      %82 = sbr.rel (0) target = $region37
    $region36: #{tpu_custom_call.1} parent=1 // pred_region
      %83 = dma.done [#allocation8], 512
    $region37: #{tpu_custom_call.1} parent=1 // pred_fallthru
      _
    // Predicated region
    $region38: #{tpu_custom_call.1} parent=1 // pred_check
      _
    $region39: #{tpu_custom_call.1} parent=1 // pred_check_branch
      %85 = sbr.rel (0) target = $region41
    $region40: #{tpu_custom_call.1} parent=1 // pred_region
      %86 = dma.done [#allocation8], 512
    $region41: #{tpu_custom_call.1} parent=1 // pred_fallthru
      _
    // Predicated region
    $region42: #{tpu_custom_call.1} parent=1 // pred_check
      _
    $region43: #{tpu_custom_call.1} parent=1 // pred_check_branch
      %88 = sbr.rel (0) target = $region45
    $region44: #{tpu_custom_call.1} parent=1 // pred_region
      %89 = dma.done [#allocation11], 5120
    $region45: #{tpu_custom_call.1} parent=1 // pred_fallthru
      _
    // Predicated region
    $region46: #{tpu_custom_call.1} parent=1 // pred_check
      _
    $region47: #{tpu_custom_call.1} parent=1 // pred_check_branch
      %91 = sbr.rel (0) target = $region49
    $region48: #{tpu_custom_call.1} parent=1 // pred_region
      %92 = dma.done [#allocation11], 3072
    $region49: #{tpu_custom_call.1} parent=1 // pred_fallthru
      _
    %p94 = scmp.eq.s32.totalorder 0, 0
    // Predicated region
    $region50: #{tpu_custom_call.1} parent=1 // pred_check
      %p95 = pneg %p94
    $region51: #{tpu_custom_call.1} parent=1 // pred_check_branch
      %97 = sbr.rel (%p95) target = $region53
    $region52: #{tpu_custom_call.1} parent=1 // pred_region
      %98 = vst [vmem:[#allocation2] sm:$0xff] 0.0
      %99 = vst [vmem:[#allocation3] sm:$0xff] -inf
    $region53: #{tpu_custom_call.1} parent=1 // pred_fallthru
      _
    %v100 = vld [vmem:[#allocation4] sm:$0xf]
    %v101 = vld [vmem:[#allocation4 + $0x4] sm:$0xf]
    %v102 = vld [vmem:[#allocation4 + $0x8] sm:$0xf]
    %v103 = vld [vmem:[#allocation4 + $0xc] sm:$0xf]
    %v104 = vld [vmem:[#allocation4 + $0x10] sm:$0xf]
    %v105 = vld [vmem:[#allocation4 + $0x14] sm:$0xf]
    %v106 = vld [vmem:[#allocation4 + $0x18] sm:$0xf]
    %v107 = vld [vmem:[#allocation4 + $0x1c] sm:$0xf]
    %v108 = vld [vmem:[#allocation4 + $0x20] sm:$0xf]
    %v109 = vld [vmem:[#allocation4 + $0x24] sm:$0xf]
    %v110 = vld [vmem:[#allocation4 + $0x28] sm:$0xf]
    %v111 = vld [vmem:[#allocation4 + $0x2c] sm:$0xf]
    %v112 = vld [vmem:[#allocation4 + $0x30] sm:$0xf]
    %v113 = vld [vmem:[#allocation4 + $0x34] sm:$0xf]
    %v114 = vld [vmem:[#allocation4 + $0x38] sm:$0xf]
    %v115 = vld [vmem:[#allocation4 + $0x3c] sm:$0xf]
    %v116 = vld [vmem:[#allocation4 + $0x40] sm:$0xf]
    %v117 = vld [vmem:[#allocation4 + $0x44] sm:$0xf]
    %v118 = vld [vmem:[#allocation4 + $0x48] sm:$0xf]
    %v119 = vld [vmem:[#allocation4 + $0x4c] sm:$0xf]
    %v120 = vld [vmem:[#allocation4 + $0x50] sm:$0xf]
    %v121 = vld [vmem:[#allocation4 + $0x54] sm:$0xf]
    %v122 = vld [vmem:[#allocation4 + $0x58] sm:$0xf]
    %v123 = vld [vmem:[#allocation4 + $0x5c] sm:$0xf]
    %v124 = vld [vmem:[#allocation4 + $0x60] sm:$0xf]
    %v125 = vld [vmem:[#allocation4 + $0x64] sm:$0xf]
    %v126 = vld [vmem:[#allocation4 + $0x68] sm:$0xf]
    %v127 = vld [vmem:[#allocation4 + $0x6c] sm:$0xf]
    %v128 = vld [vmem:[#allocation4 + $0x70] sm:$0xf]
    %v129 = vld [vmem:[#allocation4 + $0x74] sm:$0xf]
    %v130 = vld [vmem:[#allocation4 + $0x78] sm:$0xf]
    %v131 = vld [vmem:[#allocation4 + $0x7c] sm:$0xf]
    %v132 = vld [vmem:[#allocation4 + $0x80] sm:$0xf]
    %v133 = vld [vmem:[#allocation4 + $0x84] sm:$0xf]
    %v134 = vld [vmem:[#allocation4 + $0x88] sm:$0xf]
    %v135 = vld [vmem:[#allocation4 + $0x8c] sm:$0xf]
    %v136 = vld [vmem:[#allocation4 + $0x90] sm:$0xf]
    %v137 = vld [vmem:[#allocation4 + $0x94] sm:$0xf]
    %v138 = vld [vmem:[#allocation4 + $0x98] sm:$0xf]
    %v139 = vld [vmem:[#allocation4 + $0x9c] sm:$0xf]
    %v140 = vld [vmem:[#allocation4 + $0xa0] sm:$0xf]
    %v141 = vld [vmem:[#allocation4 + $0xa4] sm:$0xf]
    %v142 = vld [vmem:[#allocation4 + $0xa8] sm:$0xf]
    %v143 = vld [vmem:[#allocation4 + $0xac] sm:$0xf]
    %v144 = vld [vmem:[#allocation4 + $0xb0] sm:$0xf]
    %v145 = vld [vmem:[#allocation4 + $0xb4] sm:$0xf]
    %v146 = vld [vmem:[#allocation4 + $0xb8] sm:$0xf]
    %v147 = vld [vmem:[#allocation4 + $0xbc] sm:$0xf]
    %v148 = vld [vmem:[#allocation4 + $0xc0] sm:$0xf]
    %v149 = vld [vmem:[#allocation4 + $0xc4] sm:$0xf]
    %v150 = vld [vmem:[#allocation4 + $0xc8] sm:$0xf]
    %v151 = vld [vmem:[#allocation4 + $0xcc] sm:$0xf]
    %v152 = vld [vmem:[#allocation4 + $0xd0] sm:$0xf]
    %v153 = vld [vmem:[#allocation4 + $0xd4] sm:$0xf]
    %v154 = vld [vmem:[#allocation4 + $0xd8] sm:$0xf]
    %v155 = vld [vmem:[#allocation4 + $0xdc] sm:$0xf]
    %v156 = vld [vmem:[#allocation4 + $0xe0] sm:$0xf]
    %v157 = vld [vmem:[#allocation4 + $0xe4] sm:$0xf]
    %v158 = vld [vmem:[#allocation4 + $0xe8] sm:$0xf]
    %v159 = vld [vmem:[#allocation4 + $0xec] sm:$0xf]
    %v160 = vld [vmem:[#allocation4 + $0xf0] sm:$0xf]
    %v161 = vld [vmem:[#allocation4 + $0xf4] sm:$0xf]
    %v162 = vld [vmem:[#allocation4 + $0xf8] sm:$0xf]
    %v163 = vld [vmem:[#allocation4 + $0xfc] sm:$0xf]
    %v164 = vld [vmem:[#allocation4 + $0x100] sm:$0xf]
    %v165 = vld [vmem:[#allocation4 + $0x104] sm:$0xf]
    %v166 = vld [vmem:[#allocation4 + $0x108] sm:$0xf]
    %v167 = vld [vmem:[#allocation4 + $0x10c] sm:$0xf]
    %v168 = vld [vmem:[#allocation4 + $0x110] sm:$0xf]
    %v169 = vld [vmem:[#allocation4 + $0x114] sm:$0xf]
    %v170 = vld [vmem:[#allocation4 + $0x118] sm:$0xf]
    %v171 = vld [vmem:[#allocation4 + $0x11c] sm:$0xf]
    %v172 = vld [vmem:[#allocation4 + $0x120] sm:$0xf]
    %v173 = vld [vmem:[#allocation4 + $0x124] sm:$0xf]
    %v174 = vld [vmem:[#allocation4 + $0x128] sm:$0xf]
    %v175 = vld [vmem:[#allocation4 + $0x12c] sm:$0xf]
    %v176 = vld [vmem:[#allocation4 + $0x130] sm:$0xf]
    %v177 = vld [vmem:[#allocation4 + $0x134] sm:$0xf]
    %v178 = vld [vmem:[#allocation4 + $0x138] sm:$0xf]
    %v179 = vld [vmem:[#allocation4 + $0x13c] sm:$0xf]
    %v180 = vld [vmem:[#allocation4 + $0x140] sm:$0xf]
    %v181 = vld [vmem:[#allocation4 + $0x144] sm:$0xf]
    %v182 = vld [vmem:[#allocation4 + $0x148] sm:$0xf]
    %v183 = vld [vmem:[#allocation4 + $0x14c] sm:$0xf]
    %v184 = vld [vmem:[#allocation4 + $0x150] sm:$0xf]
    %v185 = vld [vmem:[#allocation4 + $0x154] sm:$0xf]
    %v186 = vld [vmem:[#allocation4 + $0x158] sm:$0xf]
    %v187 = vld [vmem:[#allocation4 + $0x15c] sm:$0xf]
    %v188 = vld [vmem:[#allocation4 + $0x160] sm:$0xf]
    %v189 = vld [vmem:[#allocation4 + $0x164] sm:$0xf]
    %v190 = vld [vmem:[#allocation4 + $0x168] sm:$0xf]
    %v191 = vld [vmem:[#allocation4 + $0x16c] sm:$0xf]
    %v192 = vld [vmem:[#allocation4 + $0x170] sm:$0xf]
    %v193 = vld [vmem:[#allocation4 + $0x174] sm:$0xf]
    %v194 = vld [vmem:[#allocation4 + $0x178] sm:$0xf]
    %v195 = vld [vmem:[#allocation4 + $0x17c] sm:$0xf]
    %v196 = vld [vmem:[#allocation4 + $0x180] sm:$0xf]
    %v197 = vld [vmem:[#allocation4 + $0x184] sm:$0xf]
    %v198 = vld [vmem:[#allocation4 + $0x188] sm:$0xf]
    %v199 = vld [vmem:[#allocation4 + $0x18c] sm:$0xf]
    %v200 = vld [vmem:[#allocation4 + $0x190] sm:$0xf]
    %v201 = vld [vmem:[#allocation4 + $0x194] sm:$0xf]
    %v202 = vld [vmem:[#allocation4 + $0x198] sm:$0xf]
    %v203 = vld [vmem:[#allocation4 + $0x19c] sm:$0xf]
    %v204 = vld [vmem:[#allocation4 + $0x1a0] sm:$0xf]
    %v205 = vld [vmem:[#allocation4 + $0x1a4] sm:$0xf]
    %v206 = vld [vmem:[#allocation4 + $0x1a8] sm:$0xf]
    %v207 = vld [vmem:[#allocation4 + $0x1ac] sm:$0xf]
    %v208 = vld [vmem:[#allocation4 + $0x1b0] sm:$0xf]
    %v209 = vld [vmem:[#allocation4 + $0x1b4] sm:$0xf]
    %v210 = vld [vmem:[#allocation4 + $0x1b8] sm:$0xf]
    %v211 = vld [vmem:[#allocation4 + $0x1bc] sm:$0xf]
    %v212 = vld [vmem:[#allocation4 + $0x1c0] sm:$0xf]
    %v213 = vld [vmem:[#allocation4 + $0x1c4] sm:$0xf]
    %v214 = vld [vmem:[#allocation4 + $0x1c8] sm:$0xf]
    %v215 = vld [vmem:[#allocation4 + $0x1cc] sm:$0xf]
    %v216 = vld [vmem:[#allocation4 + $0x1d0] sm:$0xf]
    %v217 = vld [vmem:[#allocation4 + $0x1d4] sm:$0xf]
    %v218 = vld [vmem:[#allocation4 + $0x1d8] sm:$0xf]
    %v219 = vld [vmem:[#allocation4 + $0x1dc] sm:$0xf]
    %v220 = vld [vmem:[#allocation4 + $0x1e0] sm:$0xf]
    %v221 = vld [vmem:[#allocation4 + $0x1e4] sm:$0xf]
    %v222 = vld [vmem:[#allocation4 + $0x1e8] sm:$0xf]
    %v223 = vld [vmem:[#allocation4 + $0x1ec] sm:$0xf]
    %v224 = vld [vmem:[#allocation4 + $0x1f0] sm:$0xf]
    %v225 = vld [vmem:[#allocation4 + $0x1f4] sm:$0xf]
    %v226 = vld [vmem:[#allocation4 + $0x1f8] sm:$0xf]
    %v227 = vld [vmem:[#allocation4 + $0x1fc] sm:$0xf]
    %v228 = vld [vmem:[#allocation2] sm:$0xff]
    %v229 = vld [vmem:[#allocation9] sm:$0xff]
    %v230 = vld [vmem:[#allocation9 + $0x8] sm:$0xff]
    %v231 = vld [vmem:[#allocation9 + $0x10] sm:$0xff]
    %v232 = vld [vmem:[#allocation9 + $0x18] sm:$0xff]
    %v237 = vunpack.c.l.b16 %v229
    %v238 = vunpack.c.h.b16 %v229
    %v239 = vunpack.c.l.b16 %v230
    %v240 = vunpack.c.h.b16 %v230
    %v241 = vunpack.c.l.b16 %v231
    %v242 = vunpack.c.h.b16 %v231
    %v243 = vunpack.c.l.b16 %v232
    %v244 = vunpack.c.h.b16 %v232
    %v245 = vpack.c.b16 %v237, %v237
    %v246 = vpack.c.b16 %v238, %v238
    %v247 = vpack.c.b16 %v239, %v239
    %v248 = vpack.c.b16 %v240, %v240
    %v249 = vpack.c.b16 %v241, %v241
    %v250 = vpack.c.b16 %v242, %v242
    %v251 = vpack.c.b16 %v243, %v243
    %v252 = vpack.c.b16 %v244, %v244
    %v389 = vunpack.c.l.b16 %v100
    %v390 = vunpack.c.l.b16 %v101
    %v391 = vunpack.c.l.b16 %v102
    %v392 = vunpack.c.l.b16 %v103
    %v393 = vunpack.c.l.b16 %v104
    %v394 = vunpack.c.l.b16 %v105
    %v395 = vunpack.c.l.b16 %v106
    %v396 = vunpack.c.l.b16 %v107
    %v397 = vunpack.c.l.b16 %v108
    %v398 = vunpack.c.l.b16 %v109
    %v399 = vunpack.c.l.b16 %v110
    %v400 = vunpack.c.l.b16 %v111
    %v401 = vunpack.c.l.b16 %v112
    %v402 = vunpack.c.l.b16 %v113
    %v403 = vunpack.c.l.b16 %v114
    %v404 = vunpack.c.l.b16 %v115
    %v405 = vunpack.c.l.b16 %v116
    %v406 = vunpack.c.l.b16 %v117
    %v407 = vunpack.c.l.b16 %v118
    %v408 = vunpack.c.l.b16 %v119
    %v409 = vunpack.c.l.b16 %v120
    %v410 = vunpack.c.l.b16 %v121
    %v411 = vunpack.c.l.b16 %v122
    %v412 = vunpack.c.l.b16 %v123
    %v413 = vunpack.c.l.b16 %v124
    %v414 = vunpack.c.l.b16 %v125
    %v415 = vunpack.c.l.b16 %v126
    %v416 = vunpack.c.l.b16 %v127
    %v417 = vunpack.c.l.b16 %v128
    %v418 = vunpack.c.l.b16 %v129
    %v419 = vunpack.c.l.b16 %v130
    %v420 = vunpack.c.l.b16 %v131
    %v421 = vunpack.c.l.b16 %v132
    %v422 = vunpack.c.l.b16 %v133
    %v423 = vunpack.c.l.b16 %v134
    %v424 = vunpack.c.l.b16 %v135
    %v425 = vunpack.c.l.b16 %v136
    %v426 = vunpack.c.l.b16 %v137
    %v427 = vunpack.c.l.b16 %v138
    %v428 = vunpack.c.l.b16 %v139
    %v429 = vunpack.c.l.b16 %v140
    %v430 = vunpack.c.l.b16 %v141
    %v431 = vunpack.c.l.b16 %v142
    %v432 = vunpack.c.l.b16 %v143
    %v433 = vunpack.c.l.b16 %v144
    %v434 = vunpack.c.l.b16 %v145
    %v435 = vunpack.c.l.b16 %v146
    %v436 = vunpack.c.l.b16 %v147
    %v437 = vunpack.c.l.b16 %v148
    %v438 = vunpack.c.l.b16 %v149
    %v439 = vunpack.c.l.b16 %v150
    %v440 = vunpack.c.l.b16 %v151
    %v441 = vunpack.c.l.b16 %v152
    %v442 = vunpack.c.l.b16 %v153
    %v443 = vunpack.c.l.b16 %v154
    %v444 = vunpack.c.l.b16 %v155
    %v445 = vunpack.c.l.b16 %v156
    %v446 = vunpack.c.l.b16 %v157
    %v447 = vunpack.c.l.b16 %v158
    %v448 = vunpack.c.l.b16 %v159
    %v449 = vunpack.c.l.b16 %v160
    %v450 = vunpack.c.l.b16 %v161
    %v451 = vunpack.c.l.b16 %v162
    %v452 = vunpack.c.l.b16 %v163
    %v453 = vunpack.c.l.b16 %v164
    %v454 = vunpack.c.l.b16 %v165
    %v455 = vunpack.c.l.b16 %v166
    %v456 = vunpack.c.l.b16 %v167
    %v457 = vunpack.c.l.b16 %v168
    %v458 = vunpack.c.l.b16 %v169
    %v459 = vunpack.c.l.b16 %v170
    %v460 = vunpack.c.l.b16 %v171
    %v461 = vunpack.c.l.b16 %v172
    %v462 = vunpack.c.l.b16 %v173
    %v463 = vunpack.c.l.b16 %v174
    %v464 = vunpack.c.l.b16 %v175
    %v465 = vunpack.c.l.b16 %v176
    %v466 = vunpack.c.l.b16 %v177
    %v467 = vunpack.c.l.b16 %v178
    %v468 = vunpack.c.l.b16 %v179
    %v469 = vunpack.c.l.b16 %v180
    %v470 = vunpack.c.l.b16 %v181
    %v471 = vunpack.c.l.b16 %v182
    %v472 = vunpack.c.l.b16 %v183
    %v473 = vunpack.c.l.b16 %v184
    %v474 = vunpack.c.l.b16 %v185
    %v475 = vunpack.c.l.b16 %v186
    %v476 = vunpack.c.l.b16 %v187
    %v477 = vunpack.c.l.b16 %v188
    %v478 = vunpack.c.l.b16 %v189
    %v479 = vunpack.c.l.b16 %v190
    %v480 = vunpack.c.l.b16 %v191
    %v481 = vunpack.c.l.b16 %v192
    %v482 = vunpack.c.l.b16 %v193
    %v483 = vunpack.c.l.b16 %v194
    %v484 = vunpack.c.l.b16 %v195
    %v485 = vunpack.c.l.b16 %v196
    %v486 = vunpack.c.l.b16 %v197
    %v487 = vunpack.c.l.b16 %v198
    %v488 = vunpack.c.l.b16 %v199
    %v489 = vunpack.c.l.b16 %v200
    %v490 = vunpack.c.l.b16 %v201
    %v491 = vunpack.c.l.b16 %v202
    %v492 = vunpack.c.l.b16 %v203
    %v493 = vunpack.c.l.b16 %v204
    %v494 = vunpack.c.l.b16 %v205
    %v495 = vunpack.c.l.b16 %v206
    %v496 = vunpack.c.l.b16 %v207
    %v497 = vunpack.c.l.b16 %v208
    %v498 = vunpack.c.l.b16 %v209
    %v499 = vunpack.c.l.b16 %v210
    %v500 = vunpack.c.l.b16 %v211
    %v501 = vunpack.c.l.b16 %v212
    %v502 = vunpack.c.l.b16 %v213
    %v503 = vunpack.c.l.b16 %v214
    %v504 = vunpack.c.l.b16 %v215
    %v505 = vunpack.c.l.b16 %v216
    %v506 = vunpack.c.l.b16 %v217
    %v507 = vunpack.c.l.b16 %v218
    %v508 = vunpack.c.l.b16 %v219
    %v509 = vunpack.c.l.b16 %v220
    %v510 = vunpack.c.l.b16 %v221
    %v511 = vunpack.c.l.b16 %v222
    %v512 = vunpack.c.l.b16 %v223
    %v513 = vunpack.c.l.b16 %v224
    %v514 = vunpack.c.l.b16 %v225
    %v515 = vunpack.c.l.b16 %v226
    %v516 = vunpack.c.l.b16 %v227
    %v517 = vpack.c.b16 %v390, %v389
    %v518 = vpack.c.b16 %v392, %v391
    %v519 = vpack.c.b16 %v394, %v393
    %v520 = vpack.c.b16 %v396, %v395
    %v521 = vpack.c.b16 %v398, %v397
    %v522 = vpack.c.b16 %v400, %v399
    %v523 = vpack.c.b16 %v402, %v401
    %v524 = vpack.c.b16 %v404, %v403
    %v525 = vpack.c.b16 %v406, %v405
    %v526 = vpack.c.b16 %v408, %v407
    %v527 = vpack.c.b16 %v410, %v409
    %v528 = vpack.c.b16 %v412, %v411
    %v529 = vpack.c.b16 %v414, %v413
    %v530 = vpack.c.b16 %v416, %v415
    %v531 = vpack.c.b16 %v418, %v417
    %v532 = vpack.c.b16 %v420, %v419
    %v533 = vpack.c.b16 %v422, %v421
    %v534 = vpack.c.b16 %v424, %v423
    %v535 = vpack.c.b16 %v426, %v425
    %v536 = vpack.c.b16 %v428, %v427
    %v537 = vpack.c.b16 %v430, %v429
    %v538 = vpack.c.b16 %v432, %v431
    %v539 = vpack.c.b16 %v434, %v433
    %v540 = vpack.c.b16 %v436, %v435
    %v541 = vpack.c.b16 %v438, %v437
    %v542 = vpack.c.b16 %v440, %v439
    %v543 = vpack.c.b16 %v442, %v441
    %v544 = vpack.c.b16 %v444, %v443
    %v545 = vpack.c.b16 %v446, %v445
    %v546 = vpack.c.b16 %v448, %v447
    %v547 = vpack.c.b16 %v450, %v449
    %v548 = vpack.c.b16 %v452, %v451
    %v549 = vpack.c.b16 %v454, %v453
    %v550 = vpack.c.b16 %v456, %v455
    %v551 = vpack.c.b16 %v458, %v457
    %v552 = vpack.c.b16 %v460, %v459
    %v553 = vpack.c.b16 %v462, %v461
    %v554 = vpack.c.b16 %v464, %v463
    %v555 = vpack.c.b16 %v466, %v465
    %v556 = vpack.c.b16 %v468, %v467
    %v557 = vpack.c.b16 %v470, %v469
    %v558 = vpack.c.b16 %v472, %v471
    %v559 = vpack.c.b16 %v474, %v473
    %v560 = vpack.c.b16 %v476, %v475
    %v561 = vpack.c.b16 %v478, %v477
    %v562 = vpack.c.b16 %v480, %v479
    %v563 = vpack.c.b16 %v482, %v481
    %v564 = vpack.c.b16 %v484, %v483
    %v565 = vpack.c.b16 %v486, %v485
    %v566 = vpack.c.b16 %v488, %v487
    %v567 = vpack.c.b16 %v490, %v489
    %v568 = vpack.c.b16 %v492, %v491
    %v569 = vpack.c.b16 %v494, %v493
    %v570 = vpack.c.b16 %v496, %v495
    %v571 = vpack.c.b16 %v498, %v497
    %v572 = vpack.c.b16 %v500, %v499
    %v573 = vpack.c.b16 %v502, %v501
    %v574 = vpack.c.b16 %v504, %v503
    %v575 = vpack.c.b16 %v506, %v505
    %v576 = vpack.c.b16 %v508, %v507
    %v577 = vpack.c.b16 %v510, %v509
    %v578 = vpack.c.b16 %v512, %v511
    %v579 = vpack.c.b16 %v514, %v513
    %v580 = vpack.c.b16 %v516, %v515
    %645 = vmatprep.subr.bf16.mxu0 0
    %646 = vmatpush1.bf16.msra.mxu0 %v517
    %647 = vmatprep.subr.bf16.mxu0 0
    %648 = vmatpush1.bf16.msra.mxu0 %v518
    %649 = vmatprep.subr.bf16.mxu0 0
    %650 = vmatpush1.bf16.msra.mxu0 %v519
    %651 = vmatprep.subr.bf16.mxu0 0
    %652 = vmatpush1.bf16.msra.mxu0 %v520
    %653 = vmatprep.subr.bf16.mxu0 0
    %654 = vmatpush1.bf16.msra.mxu0 %v521
    %655 = vmatprep.subr.bf16.mxu0 0
    %656 = vmatpush1.bf16.msra.mxu0 %v522
    %657 = vmatprep.subr.bf16.mxu0 0
    %658 = vmatpush1.bf16.msra.mxu0 %v523
    %659 = vmatprep.subr.bf16.mxu0 0
    %660 = vmatpush1.bf16.msra.mxu0 %v524
    %661 = vmatprep.subr.bf16.mxu0 0
    %662 = vmatpush1.bf16.msra.mxu0 %v525
    %663 = vmatprep.subr.bf16.mxu0 0
    %664 = vmatpush1.bf16.msra.mxu0 %v526
    %665 = vmatprep.subr.bf16.mxu0 0
    %666 = vmatpush1.bf16.msra.mxu0 %v527
    %667 = vmatprep.subr.bf16.mxu0 0
    %668 = vmatpush1.bf16.msra.mxu0 %v528
    %669 = vmatprep.subr.bf16.mxu0 0
    %670 = vmatpush1.bf16.msra.mxu0 %v529
    %671 = vmatprep.subr.bf16.mxu0 0
    %672 = vmatpush1.bf16.msra.mxu0 %v530
    %673 = vmatprep.subr.bf16.mxu0 0
    %674 = vmatpush1.bf16.msra.mxu0 %v531
    %675 = vmatprep.subr.bf16.mxu0 0
    %676 = vmatpush1.bf16.msra.mxu0 %v532
    %677 = vmatprep.mubr.bf16.mxu0 %v246
    %678 = vmatmul.mubr.bf16.gmra.mrb[0].mxu0 %v245
    %v679 = vpop.f32.mrb[0].mxu0
    %v680 = vadd.f32 0.0, %v679
    %v681 = vpop.f32.mrb[0].mxu0
    %v682 = vpop.f32.mrb[0].mxu0
    %v683 = vpop.f32.mrb[0].mxu0
    %684 = vdwg.mxu0
    %685 = vmatprep.subr.bf16.mxu0 0
    %686 = vmatpush1.bf16.msra.mxu0 %v533
    %687 = vmatprep.subr.bf16.mxu0 0
    %688 = vmatpush1.bf16.msra.mxu0 %v534
    %689 = vmatprep.subr.bf16.mxu0 0
    %690 = vmatpush1.bf16.msra.mxu0 %v535
    %691 = vmatprep.subr.bf16.mxu0 0
    %692 = vmatpush1.bf16.msra.mxu0 %v536
    %693 = vmatprep.subr.bf16.mxu0 0
    %694 = vmatpush1.bf16.msra.mxu0 %v537
    %695 = vmatprep.subr.bf16.mxu0 0
    %696 = vmatpush1.bf16.msra.mxu0 %v538
    %697 = vmatprep.subr.bf16.mxu0 0
    %698 = vmatpush1.bf16.msra.mxu0 %v539
    %699 = vmatprep.subr.bf16.mxu0 0
    %700 = vmatpush1.bf16.msra.mxu0 %v540
    %701 = vmatprep.subr.bf16.mxu0 0
    %702 = vmatpush1.bf16.msra.mxu0 %v541
    %703 = vmatprep.subr.bf16.mxu0 0
    %704 = vmatpush1.bf16.msra.mxu0 %v542
    %705 = vmatprep.subr.bf16.mxu0 0
    %706 = vmatpush1.bf16.msra.mxu0 %v543
    %707 = vmatprep.subr.bf16.mxu0 0
    %708 = vmatpush1.bf16.msra.mxu0 %v544
    %709 = vmatprep.subr.bf16.mxu0 0
    %710 = vmatpush1.bf16.msra.mxu0 %v545
    %711 = vmatprep.subr.bf16.mxu0 0
    %712 = vmatpush1.bf16.msra.mxu0 %v546
    %713 = vmatprep.subr.bf16.mxu0 0
    %714 = vmatpush1.bf16.msra.mxu0 %v547
    %715 = vmatprep.subr.bf16.mxu0 0
    %716 = vmatpush1.bf16.msra.mxu0 %v548
    %717 = vmatprep.mubr.bf16.mxu0 %v248
    %718 = vmatmul.mubr.bf16.gmra.mrb[0].mxu0 %v247
    %v719 = vpop.f32.mrb[0].mxu0
    %v720 = vadd.f32 %v680, %v719
    %v721 = vpop.f32.mrb[0].mxu0
    %v722 = vpop.f32.mrb[0].mxu0
    %v723 = vpop.f32.mrb[0].mxu0
    %724 = vdwg.mxu0
    %725 = vmatprep.subr.bf16.mxu0 0
    %726 = vmatpush1.bf16.msra.mxu0 %v549
    %727 = vmatprep.subr.bf16.mxu0 0
    %728 = vmatpush1.bf16.msra.mxu0 %v550
    %729 = vmatprep.subr.bf16.mxu0 0
    %730 = vmatpush1.bf16.msra.mxu0 %v551
    %731 = vmatprep.subr.bf16.mxu0 0
    %732 = vmatpush1.bf16.msra.mxu0 %v552
    %733 = vmatprep.subr.bf16.mxu0 0
    %734 = vmatpush1.bf16.msra.mxu0 %v553
    %735 = vmatprep.subr.bf16.mxu0 0
    %736 = vmatpush1.bf16.msra.mxu0 %v554
    %737 = vmatprep.subr.bf16.mxu0 0
    %738 = vmatpush1.bf16.msra.mxu0 %v555
    %739 = vmatprep.subr.bf16.mxu0 0
    %740 = vmatpush1.bf16.msra.mxu0 %v556
    %741 = vmatprep.subr.bf16.mxu0 0
    %742 = vmatpush1.bf16.msra.mxu0 %v557
    %743 = vmatprep.subr.bf16.mxu0 0
    %744 = vmatpush1.bf16.msra.mxu0 %v558
    %745 = vmatprep.subr.bf16.mxu0 0
    %746 = vmatpush1.bf16.msra.mxu0 %v559
    %747 = vmatprep.subr.bf16.mxu0 0
    %748 = vmatpush1.bf16.msra.mxu0 %v560
    %749 = vmatprep.subr.bf16.mxu0 0
    %750 = vmatpush1.bf16.msra.mxu0 %v561
    %751 = vmatprep.subr.bf16.mxu0 0
    %752 = vmatpush1.bf16.msra.mxu0 %v562
    %753 = vmatprep.subr.bf16.mxu0 0
    %754 = vmatpush1.bf16.msra.mxu0 %v563
    %755 = vmatprep.subr.bf16.mxu0 0
    %756 = vmatpush1.bf16.msra.mxu0 %v564
    %757 = vmatprep.mubr.bf16.mxu0 %v250
    %758 = vmatmul.mubr.bf16.gmra.mrb[0].mxu0 %v249
    %v759 = vpop.f32.mrb[0].mxu0
    %v760 = vadd.f32 %v720, %v759
    %v761 = vpop.f32.mrb[0].mxu0
    %v762 = vpop.f32.mrb[0].mxu0
    %v763 = vpop.f32.mrb[0].mxu0
    %764 = vdwg.mxu0
    %765 = vmatprep.subr.bf16.mxu0 0
    %766 = vmatpush1.bf16.msra.mxu0 %v565
    %767 = vmatprep.subr.bf16.mxu0 0
    %768 = vmatpush1.bf16.msra.mxu0 %v566
    %769 = vmatprep.subr.bf16.mxu0 0
    %770 = vmatpush1.bf16.msra.mxu0 %v567
    %771 = vmatprep.subr.bf16.mxu0 0
    %772 = vmatpush1.bf16.msra.mxu0 %v568
    %773 = vmatprep.subr.bf16.mxu0 0
    %774 = vmatpush1.bf16.msra.mxu0 %v569
    %775 = vmatprep.subr.bf16.mxu0 0
    %776 = vmatpush1.bf16.msra.mxu0 %v570
    %777 = vmatprep.subr.bf16.mxu0 0
    %778 = vmatpush1.bf16.msra.mxu0 %v571
    %779 = vmatprep.subr.bf16.mxu0 0
    %780 = vmatpush1.bf16.msra.mxu0 %v572
    %781 = vmatprep.subr.bf16.mxu0 0
    %782 = vmatpush1.bf16.msra.mxu0 %v573
    %783 = vmatprep.subr.bf16.mxu0 0
    %784 = vmatpush1.bf16.msra.mxu0 %v574
    %785 = vmatprep.subr.bf16.mxu0 0
    %786 = vmatpush1.bf16.msra.mxu0 %v575
    %787 = vmatprep.subr.bf16.mxu0 0
    %788 = vmatpush1.bf16.msra.mxu0 %v576
    %789 = vmatprep.subr.bf16.mxu0 0
    %790 = vmatpush1.bf16.msra.mxu0 %v577
    %791 = vmatprep.subr.bf16.mxu0 0
    %792 = vmatpush1.bf16.msra.mxu0 %v578
    %793 = vmatprep.subr.bf16.mxu0 0
    %794 = vmatpush1.bf16.msra.mxu0 %v579
    %795 = vmatprep.subr.bf16.mxu0 0
    %796 = vmatpush1.bf16.msra.mxu0 %v580
    %797 = vmatprep.mubr.bf16.mxu0 %v252
    %798 = vmatmul.mubr.bf16.gmra.mrb[0].mxu0 %v251
    %v799 = vpop.f32.mrb[0].mxu0
    %v800 = vadd.f32 %v760, %v799
    %v801 = vpop.f32.mrb[0].mxu0
    %v802 = vpop.f32.mrb[0].mxu0
    %v803 = vpop.f32.mrb[0].mxu0
    %804 = vdwg.mxu0
    %v805 = vadd.f32 %v228, %v800
    %806 = vst [vmem:[#allocation2] sm:$0xff] %v805
    %v807 = vmax.bf16 %v517, %v518
    %v808 = vmax.bf16 %v807, %v519
    %v809 = vmax.bf16 %v808, %v520
    %v810 = vmax.bf16 %v809, %v521
    %v811 = vmax.bf16 %v810, %v522
    %v812 = vmax.bf16 %v811, %v523
    %v813 = vmax.bf16 %v812, %v524
    %v814 = vunpack.i.l.bf16 %v813
    %v815 = vunpack.i.h.bf16 %v813
    %v816 = vmax.f32 %v814, %v815
    %v817 = vrot.slane %v816, 4
    %v818 = vmax.f32 %v816, %v817
    %v819 = vrot.slane %v818, 2
    %v820 = vmax.f32 %v818, %v819
    %v821 = vrot.slane %v820, 1
    %v822 = vmax.f32 %v820, %v821
    %v823 = vpack.i.bf16 %v822, %v822
    %v824 = vmax.bf16 %v525, %v526
    %v825 = vmax.bf16 %v824, %v527
    %v826 = vmax.bf16 %v825, %v528
    %v827 = vmax.bf16 %v826, %v529
    %v828 = vmax.bf16 %v827, %v530
    %v829 = vmax.bf16 %v828, %v531
    %v830 = vmax.bf16 %v829, %v532
    %v831 = vunpack.i.l.bf16 %v830
    %v832 = vunpack.i.h.bf16 %v830
    %v833 = vmax.f32 %v831, %v832
    %v834 = vrot.slane %v833, 4
    %v835 = vmax.f32 %v833, %v834
    %v836 = vrot.slane %v835, 2
    %v837 = vmax.f32 %v835, %v836
    %v838 = vrot.slane %v837, 1
    %v839 = vmax.f32 %v837, %v838
    %v840 = vpack.i.bf16 %v839, %v839
    %v841 = vmax.bf16 %v533, %v534
    %v842 = vmax.bf16 %v841, %v535
    %v843 = vmax.bf16 %v842, %v536
    %v844 = vmax.bf16 %v843, %v537
    %v845 = vmax.bf16 %v844, %v538
    %v846 = vmax.bf16 %v845, %v539
    %v847 = vmax.bf16 %v846, %v540
    %v848 = vunpack.i.l.bf16 %v847
    %v849 = vunpack.i.h.bf16 %v847
    %v850 = vmax.f32 %v848, %v849
    %v851 = vrot.slane %v850, 4
    %v852 = vmax.f32 %v850, %v851
    %v853 = vrot.slane %v852, 2
    %v854 = vmax.f32 %v852, %v853
    %v855 = vrot.slane %v854, 1
    %v856 = vmax.f32 %v854, %v855
    %v857 = vpack.i.bf16 %v856, %v856
    %v858 = vmax.bf16 %v541, %v542
    %v859 = vmax.bf16 %v858, %v543
    %v860 = vmax.bf16 %v859, %v544
    %v861 = vmax.bf16 %v860, %v545
    %v862 = vmax.bf16 %v861, %v546
    %v863 = vmax.bf16 %v862, %v547
    %v864 = vmax.bf16 %v863, %v548
    %v865 = vunpack.i.l.bf16 %v864
    %v866 = vunpack.i.h.bf16 %v864
    %v867 = vmax.f32 %v865, %v866
    %v868 = vrot.slane %v867, 4
    %v869 = vmax.f32 %v867, %v868
    %v870 = vrot.slane %v869, 2
    %v871 = vmax.f32 %v869, %v870
    %v872 = vrot.slane %v871, 1
    %v873 = vmax.f32 %v871, %v872
    %v874 = vpack.i.bf16 %v873, %v873
    %v875 = vmax.bf16 %v549, %v550
    %v876 = vmax.bf16 %v875, %v551
    %v877 = vmax.bf16 %v876, %v552
    %v878 = vmax.bf16 %v877, %v553
    %v879 = vmax.bf16 %v878, %v554
    %v880 = vmax.bf16 %v879, %v555
    %v881 = vmax.bf16 %v880, %v556
    %v882 = vunpack.i.l.bf16 %v881
    %v883 = vunpack.i.h.bf16 %v881
    %v884 = vmax.f32 %v882, %v883
    %v885 = vrot.slane %v884, 4
    %v886 = vmax.f32 %v884, %v885
    %v887 = vrot.slane %v886, 2
    %v888 = vmax.f32 %v886, %v887
    %v889 = vrot.slane %v888, 1
    %v890 = vmax.f32 %v888, %v889
    %v891 = vpack.i.bf16 %v890, %v890
    %v892 = vmax.bf16 %v557, %v558
    %v893 = vmax.bf16 %v892, %v559
    %v894 = vmax.bf16 %v893, %v560
    %v895 = vmax.bf16 %v894, %v561
    %v896 = vmax.bf16 %v895, %v562
    %v897 = vmax.bf16 %v896, %v563
    %v898 = vmax.bf16 %v897, %v564
    %v899 = vunpack.i.l.bf16 %v898
    %v900 = vunpack.i.h.bf16 %v898
    %v901 = vmax.f32 %v899, %v900
    %v902 = vrot.slane %v901, 4
    %v903 = vmax.f32 %v901, %v902
    %v904 = vrot.slane %v903, 2
    %v905 = vmax.f32 %v903, %v904
    %v906 = vrot.slane %v905, 1
    %v907 = vmax.f32 %v905, %v906
    %v908 = vpack.i.bf16 %v907, %v907
    %v909 = vmax.bf16 %v565, %v566
    %v910 = vmax.bf16 %v909, %v567
    %v911 = vmax.bf16 %v910, %v568
    %v912 = vmax.bf16 %v911, %v569
    %v913 = vmax.bf16 %v912, %v570
    %v914 = vmax.bf16 %v913, %v571
    %v915 = vmax.bf16 %v914, %v572
    %v916 = vunpack.i.l.bf16 %v915
    %v917 = vunpack.i.h.bf16 %v915
    %v918 = vmax.f32 %v916, %v917
    %v919 = vrot.slane %v918, 4
    %v920 = vmax.f32 %v918, %v919
    %v921 = vrot.slane %v920, 2
    %v922 = vmax.f32 %v920, %v921
    %v923 = vrot.slane %v922, 1
    %v924 = vmax.f32 %v922, %v923
    %v925 = vpack.i.bf16 %v924, %v924
    %v926 = vmax.bf16 %v573, %v574
    %v927 = vmax.bf16 %v926, %v575
    %v928 = vmax.bf16 %v927, %v576
    %v929 = vmax.bf16 %v928, %v577
    %v930 = vmax.bf16 %v929, %v578
    %v931 = vmax.bf16 %v930, %v579
    %v932 = vmax.bf16 %v931, %v580
    %v933 = vunpack.i.l.bf16 %v932
    %v934 = vunpack.i.h.bf16 %v932
    %v935 = vmax.f32 %v933, %v934
    %v936 = vrot.slane %v935, 4
    %v937 = vmax.f32 %v935, %v936
    %v938 = vrot.slane %v937, 2
    %v939 = vmax.f32 %v937, %v938
    %v940 = vrot.slane %v939, 1
    %v941 = vmax.f32 %v939, %v940
    %v942 = vpack.i.bf16 %v941, %v941
    %v943 = vld [vmem:[#allocation3] sm:$0xff]
    %v944 = vunpack.c.l.bf16 %v823
    %v945 = vunpack.c.l.bf16 %v840
    %v946 = vunpack.c.l.bf16 %v857
    %v947 = vunpack.c.l.bf16 %v874
    %v948 = vunpack.c.l.bf16 %v891
    %v949 = vunpack.c.l.bf16 %v908
    %v950 = vunpack.c.l.bf16 %v925
    %v951 = vunpack.c.l.bf16 %v942
    %vm960 = vcmask 1041409
    %v961 = vsel %vm960, %v945, %v944
    %vm962 = vcmask 1042434
    %v963 = vsel %vm962, %v946, %v961
    %vm964 = vcmask 1043459
    %v965 = vsel %vm964, %v947, %v963
    %vm966 = vcmask 1044484
    %v967 = vsel %vm966, %v948, %v965
    %vm968 = vcmask 1045509
    %v969 = vsel %vm968, %v949, %v967
    %vm970 = vcmask 1046534
    %v971 = vsel %vm970, %v950, %v969
    %vm972 = vcmask 1047559
    %v973 = vsel %vm972, %v951, %v971
    %v975 = vmax.f32 %v943, %v973
    %976 = vst [vmem:[#allocation3] sm:$0xff] %v975
    // Predicated region
    $region54: #{tpu_custom_call.1} parent=1 // pred_check
      %p977 = pneg %p94
    $region55: #{tpu_custom_call.1} parent=1 // pred_check_branch
      %979 = sbr.rel (%p977) target = $region57
    $region56: #{tpu_custom_call.1} parent=1 // pred_region
      %v980 = vld [vmem:[#allocation7] sm:$0xff]
      %v981 = vld [vmem:[#allocation7 + $0x8] sm:$0xff]
      %v982 = vld [vmem:[#allocation7 + $0x10] sm:$0xff]
      %v983 = vld [vmem:[#allocation7 + $0x18] sm:$0xff]
      %v984 = vld [vmem:[#allocation2] sm:$0xff]
      %v985 = vmul.f32 %v984, 0.0078125
      %v986 = vld [vmem:[#allocation3] sm:$0xff]
      %v987 = vld [vmem:[#allocation10] sm:$0xf]
      %v988 = vld [vmem:[#allocation10 + $0x4] sm:$0xf]
      %v989 = vld [vmem:[#allocation10 + $0x8] sm:$0xf]
      %v990 = vld [vmem:[#allocation10 + $0xc] sm:$0xf]
      %v991 = vld [vmem:[#allocation10 + $0x10] sm:$0xf]
      %v992 = vld [vmem:[#allocation10 + $0x14] sm:$0xf]
      %v993 = vld [vmem:[#allocation10 + $0x18] sm:$0xf]
      %v994 = vld [vmem:[#allocation10 + $0x1c] sm:$0xf]
      %v995 = vld [vmem:[#allocation10 + $0x20] sm:$0xf]
      %v996 = vld [vmem:[#allocation10 + $0x24] sm:$0xf]
      %v997 = vld [vmem:[#allocation10 + $0x28] sm:$0xf]
      %v998 = vld [vmem:[#allocation10 + $0x2c] sm:$0xf]
      %v999 = vld [vmem:[#allocation10 + $0x30] sm:$0xf]
      %v1000 = vld [vmem:[#allocation10 + $0x34] sm:$0xf]
      %v1001 = vld [vmem:[#allocation10 + $0x38] sm:$0xf]
      %v1002 = vld [vmem:[#allocation10 + $0x3c] sm:$0xf]
      %v1003 = vpack.c.bf16 %v983, %v983
      %v1004 = vld [vmem:[%s5] sm:$0x1]
      %v1006 = vlaneseq
      %v1007 = vshrl.u32 %v1006, 7
      %v1008 = vsub.s32 0, %v1007
      %v1009 = vrot.slane %v1004, %v1008
      %v1027 = vunpack.c.l.b16 %v987
      %v1028 = vunpack.c.l.b16 %v988
      %v1029 = vunpack.c.l.b16 %v989
      %v1030 = vunpack.c.l.b16 %v990
      %v1031 = vunpack.c.l.b16 %v991
      %v1032 = vunpack.c.l.b16 %v992
      %v1033 = vunpack.c.l.b16 %v993
      %v1034 = vunpack.c.l.b16 %v994
      %v1035 = vunpack.c.l.b16 %v995
      %v1036 = vunpack.c.l.b16 %v996
      %v1037 = vunpack.c.l.b16 %v997
      %v1038 = vunpack.c.l.b16 %v998
      %v1039 = vunpack.c.l.b16 %v999
      %v1040 = vunpack.c.l.b16 %v1000
      %v1041 = vunpack.c.l.b16 %v1001
      %v1042 = vunpack.c.l.b16 %v1002
      %v1043 = vpack.c.b16 %v1028, %v1027
      %v1044 = vpack.c.b16 %v1030, %v1029
      %v1045 = vpack.c.b16 %v1032, %v1031
      %v1046 = vpack.c.b16 %v1034, %v1033
      %v1047 = vpack.c.b16 %v1036, %v1035
      %v1048 = vpack.c.b16 %v1038, %v1037
      %v1049 = vpack.c.b16 %v1040, %v1039
      %v1050 = vpack.c.b16 %v1042, %v1041
      %1059 = vmatprep.subr.bf16.mxu0 0
      %1060 = vmatpush1.bf16.msra.mxu0 %v1043
      %1061 = vmatprep.subr.bf16.mxu0 0
      %1062 = vmatpush1.bf16.msra.mxu0 %v1044
      %1063 = vmatprep.subr.bf16.mxu0 0
      %1064 = vmatpush1.bf16.msra.mxu0 %v1045
      %1065 = vmatprep.subr.bf16.mxu0 0
      %1066 = vmatpush1.bf16.msra.mxu0 %v1046
      %1067 = vmatprep.subr.bf16.mxu0 0
      %1068 = vmatpush1.bf16.msra.mxu0 %v1047
      %1069 = vmatprep.subr.bf16.mxu0 0
      %1070 = vmatpush1.bf16.msra.mxu0 %v1048
      %1071 = vmatprep.subr.bf16.mxu0 0
      %1072 = vmatpush1.bf16.msra.mxu0 %v1049
      %1073 = vmatprep.subr.bf16.mxu0 0
      %1074 = vmatpush1.bf16.msra.mxu0 %v1050
      %1075 = vmatprep.subr.bf16.mxu0 0
      %1076 = vmatpush1.bf16.msra.mxu0 0
      %1077 = vmatprep.subr.bf16.mxu0 0
      %1078 = vmatpush1.bf16.msra.mxu0 0
      %1079 = vmatprep.subr.bf16.mxu0 0
      %1080 = vmatpush1.bf16.msra.mxu0 0
      %1081 = vmatprep.subr.bf16.mxu0 0
      %1082 = vmatpush1.bf16.msra.mxu0 0
      %1083 = vmatprep.subr.bf16.mxu0 0
      %1084 = vmatpush1.bf16.msra.mxu0 0
      %1085 = vmatprep.subr.bf16.mxu0 0
      %1086 = vmatpush1.bf16.msra.mxu0 0
      %1087 = vmatprep.subr.bf16.mxu0 0
      %1088 = vmatpush1.bf16.msra.mxu0 0
      %1089 = vmatprep.subr.bf16.mxu0 0
      %1090 = vmatpush1.bf16.msra.mxu0 0
      %1091 = vmatprep.mubr.bf16.mxu0 0
      %1092 = vmatmul.mubr.bf16.gmra.mrb[0].mxu0 %v1003
      %v1093 = vpop.f32.mrb[0].mxu0
      %v1094 = vadd.f32 %v1009, %v1093
      %v1095 = vpop.f32.mrb[0].mxu0
      %v1096 = vpop.f32.mrb[0].mxu0
      %v1097 = vpop.f32.mrb[0].mxu0
      %1098 = vdwg.mxu0
      %v1099 = vtanh.pop %v1094
      %s1100 = scalar_lea.vmem [#allocation10], 64
      %v1101 = vld [vmem:[%s1100] sm:$0xf]
      %v1102 = vld [vmem:[%s1100 + $0x4] sm:$0xf]
      %v1103 = vld [vmem:[%s1100 + $0x8] sm:$0xf]
      %v1104 = vld [vmem:[%s1100 + $0xc] sm:$0xf]
      %v1105 = vld [vmem:[%s1100 + $0x10] sm:$0xf]
      %v1106 = vld [vmem:[%s1100 + $0x14] sm:$0xf]
      %v1107 = vld [vmem:[%s1100 + $0x18] sm:$0xf]
      %v1108 = vld [vmem:[%s1100 + $0x1c] sm:$0xf]
      %v1109 = vld [vmem:[%s1100 + $0x20] sm:$0xf]
      %v1110 = vld [vmem:[%s1100 + $0x24] sm:$0xf]
      %v1111 = vld [vmem:[%s1100 + $0x28] sm:$0xf]
      %v1112 = vld [vmem:[%s1100 + $0x2c] sm:$0xf]
      %v1113 = vld [vmem:[%s1100 + $0x30] sm:$0xf]
      %v1114 = vld [vmem:[%s1100 + $0x34] sm:$0xf]
      %v1115 = vld [vmem:[%s1100 + $0x38] sm:$0xf]
      %v1116 = vld [vmem:[%s1100 + $0x3c] sm:$0xf]
      %v1117 = vpack.c.bf16 %v985, %v985
      %s1118 = scalar_lea.vmem [#allocation10], 128
      %v1119 = vld [vmem:[%s1118] sm:$0xf]
      %v1120 = vld [vmem:[%s1118 + $0x4] sm:$0xf]
      %v1121 = vld [vmem:[%s1118 + $0x8] sm:$0xf]
      %v1122 = vld [vmem:[%s1118 + $0xc] sm:$0xf]
      %v1123 = vld [vmem:[%s1118 + $0x10] sm:$0xf]
      %v1124 = vld [vmem:[%s1118 + $0x14] sm:$0xf]
      %v1125 = vld [vmem:[%s1118 + $0x18] sm:$0xf]
      %v1126 = vld [vmem:[%s1118 + $0x1c] sm:$0xf]
      %v1127 = vld [vmem:[%s1118 + $0x20] sm:$0xf]
      %v1128 = vld [vmem:[%s1118 + $0x24] sm:$0xf]
      %v1129 = vld [vmem:[%s1118 + $0x28] sm:$0xf]
      %v1130 = vld [vmem:[%s1118 + $0x2c] sm:$0xf]
      %v1131 = vld [vmem:[%s1118 + $0x30] sm:$0xf]
      %v1132 = vld [vmem:[%s1118 + $0x34] sm:$0xf]
      %v1133 = vld [vmem:[%s1118 + $0x38] sm:$0xf]
      %v1134 = vld [vmem:[%s1118 + $0x3c] sm:$0xf]
      %v1135 = vpack.c.bf16 %v986, %v986
      %v1152 = vunpack.c.l.b16 %v1119
      %v1153 = vunpack.c.l.b16 %v1120
      %v1154 = vunpack.c.l.b16 %v1121
      %v1155 = vunpack.c.l.b16 %v1122
      %v1156 = vunpack.c.l.b16 %v1123
      %v1157 = vunpack.c.l.b16 %v1124
      %v1158 = vunpack.c.l.b16 %v1125
      %v1159 = vunpack.c.l.b16 %v1126
      %v1160 = vunpack.c.l.b16 %v1127
      %v1161 = vunpack.c.l.b16 %v1128
      %v1162 = vunpack.c.l.b16 %v1129
      %v1163 = vunpack.c.l.b16 %v1130
      %v1164 = vunpack.c.l.b16 %v1131
      %v1165 = vunpack.c.l.b16 %v1132
      %v1166 = vunpack.c.l.b16 %v1133
      %v1167 = vunpack.c.l.b16 %v1134
      %v1168 = vpack.c.b16 %v1153, %v1152
      %v1169 = vpack.c.b16 %v1155, %v1154
      %v1170 = vpack.c.b16 %v1157, %v1156
      %v1171 = vpack.c.b16 %v1159, %v1158
      %v1172 = vpack.c.b16 %v1161, %v1160
      %v1173 = vpack.c.b16 %v1163, %v1162
      %v1174 = vpack.c.b16 %v1165, %v1164
      %v1175 = vpack.c.b16 %v1167, %v1166
      %1184 = vmatprep.subr.bf16.mxu0 0
      %1185 = vmatpush1.bf16.msra.mxu0 %v1168
      %1186 = vmatprep.subr.bf16.mxu0 0
      %1187 = vmatpush1.bf16.msra.mxu0 %v1169
      %1188 = vmatprep.subr.bf16.mxu0 0
      %1189 = vmatpush1.bf16.msra.mxu0 %v1170
      %1190 = vmatprep.subr.bf16.mxu0 0
      %1191 = vmatpush1.bf16.msra.mxu0 %v1171
      %1192 = vmatprep.subr.bf16.mxu0 0
      %1193 = vmatpush1.bf16.msra.mxu0 %v1172
      %1194 = vmatprep.subr.bf16.mxu0 0
      %1195 = vmatpush1.bf16.msra.mxu0 %v1173
      %1196 = vmatprep.subr.bf16.mxu0 0
      %1197 = vmatpush1.bf16.msra.mxu0 %v1174
      %1198 = vmatprep.subr.bf16.mxu0 0
      %1199 = vmatpush1.bf16.msra.mxu0 %v1175
      %1200 = vmatprep.subr.bf16.mxu0 0
      %1201 = vmatpush1.bf16.msra.mxu0 0
      %1202 = vmatprep.subr.bf16.mxu0 0
      %1203 = vmatpush1.bf16.msra.mxu0 0
      %1204 = vmatprep.subr.bf16.mxu0 0
      %1205 = vmatpush1.bf16.msra.mxu0 0
      %1206 = vmatprep.subr.bf16.mxu0 0
      %1207 = vmatpush1.bf16.msra.mxu0 0
      %1208 = vmatprep.subr.bf16.mxu0 0
      %1209 = vmatpush1.bf16.msra.mxu0 0
      %1210 = vmatprep.subr.bf16.mxu0 0
      %1211 = vmatpush1.bf16.msra.mxu0 0
      %1212 = vmatprep.subr.bf16.mxu0 0
      %1213 = vmatpush1.bf16.msra.mxu0 0
      %1214 = vmatprep.subr.bf16.mxu0 0
      %1215 = vmatpush1.bf16.msra.mxu0 0
      %1216 = vmatprep.mubr.bf16.mxu0 0
      %1217 = vmatmul.mubr.bf16.gmra.mrb[0].mxu0 %v1135
      %v1218 = vpop.f32.mrb[0].mxu0
      %v1219 = vadd.f32 0.0, %v1218
      %v1220 = vpop.f32.mrb[0].mxu0
      %v1221 = vpop.f32.mrb[0].mxu0
      %v1222 = vpop.f32.mrb[0].mxu0
      %1223 = vdwg.mxu0
      %v1240 = vunpack.c.l.b16 %v1101
      %v1241 = vunpack.c.l.b16 %v1102
      %v1242 = vunpack.c.l.b16 %v1103
      %v1243 = vunpack.c.l.b16 %v1104
      %v1244 = vunpack.c.l.b16 %v1105
      %v1245 = vunpack.c.l.b16 %v1106
      %v1246 = vunpack.c.l.b16 %v1107
      %v1247 = vunpack.c.l.b16 %v1108
      %v1248 = vunpack.c.l.b16 %v1109
      %v1249 = vunpack.c.l.b16 %v1110
      %v1250 = vunpack.c.l.b16 %v1111
      %v1251 = vunpack.c.l.b16 %v1112
      %v1252 = vunpack.c.l.b16 %v1113
      %v1253 = vunpack.c.l.b16 %v1114
      %v1254 = vunpack.c.l.b16 %v1115
      %v1255 = vunpack.c.l.b16 %v1116
      %v1256 = vpack.c.b16 %v1241, %v1240
      %v1257 = vpack.c.b16 %v1243, %v1242
      %v1258 = vpack.c.b16 %v1245, %v1244
      %v1259 = vpack.c.b16 %v1247, %v1246
      %v1260 = vpack.c.b16 %v1249, %v1248
      %v1261 = vpack.c.b16 %v1251, %v1250
      %v1262 = vpack.c.b16 %v1253, %v1252
      %v1263 = vpack.c.b16 %v1255, %v1254
      %1272 = vmatprep.subr.bf16.mxu0 0
      %1273 = vmatpush1.bf16.msra.mxu0 %v1256
      %1274 = vmatprep.subr.bf16.mxu0 0
      %1275 = vmatpush1.bf16.msra.mxu0 %v1257
      %1276 = vmatprep.subr.bf16.mxu0 0
      %1277 = vmatpush1.bf16.msra.mxu0 %v1258
      %1278 = vmatprep.subr.bf16.mxu0 0
      %1279 = vmatpush1.bf16.msra.mxu0 %v1259
      %1280 = vmatprep.subr.bf16.mxu0 0
      %1281 = vmatpush1.bf16.msra.mxu0 %v1260
      %1282 = vmatprep.subr.bf16.mxu0 0
      %1283 = vmatpush1.bf16.msra.mxu0 %v1261
      %1284 = vmatprep.subr.bf16.mxu0 0
      %1285 = vmatpush1.bf16.msra.mxu0 %v1262
      %1286 = vmatprep.subr.bf16.mxu0 0
      %1287 = vmatpush1.bf16.msra.mxu0 %v1263
      %1288 = vmatprep.subr.bf16.mxu0 0
      %1289 = vmatpush1.bf16.msra.mxu0 0
      %1290 = vmatprep.subr.bf16.mxu0 0
      %1291 = vmatpush1.bf16.msra.mxu0 0
      %1292 = vmatprep.subr.bf16.mxu0 0
      %1293 = vmatpush1.bf16.msra.mxu0 0
      %1294 = vmatprep.subr.bf16.mxu0 0
      %1295 = vmatpush1.bf16.msra.mxu0 0
      %1296 = vmatprep.subr.bf16.mxu0 0
      %1297 = vmatpush1.bf16.msra.mxu0 0
      %1298 = vmatprep.subr.bf16.mxu0 0
      %1299 = vmatpush1.bf16.msra.mxu0 0
      %1300 = vmatprep.subr.bf16.mxu0 0
      %1301 = vmatpush1.bf16.msra.mxu0 0
      %1302 = vmatprep.subr.bf16.mxu0 0
      %1303 = vmatpush1.bf16.msra.mxu0 0
      %1304 = vmatprep.mubr.bf16.mxu0 0
      %1305 = vmatmul.mubr.bf16.gmra.mrb[0].mxu0 %v1117
      %v1306 = vpop.f32.mrb[0].mxu0
      %v1307 = vadd.f32 %v1219, %v1306
      %v1308 = vpop.f32.mrb[0].mxu0
      %v1309 = vpop.f32.mrb[0].mxu0
      %v1310 = vpop.f32.mrb[0].mxu0
      %1311 = vdwg.mxu0
      %s1312 = scalar_lea.vmem %s5, 1
      %v1313 = vld [vmem:[%s1312] sm:$0x1]
      %v1315 = vlaneseq
      %v1316 = vshrl.u32 %v1315, 7
      %v1317 = vsub.s32 0, %v1316
      %v1318 = vrot.slane %v1313, %v1317
      %v1320 = vadd.f32 %v1307, %v1318
      %v1321 = vtanh.pop %v1320
      %v1322 = vadd.f32 %v980, %v981
      %v1323 = vadd.f32 %v1322, %v982
      %v1324 = vadd.f32 %v1323, %v983
      %v1325 = vmul.f32 %v1324, 0.25
      %v1326 = vmax.f32 %v980, %v981
      %v1327 = vmax.f32 %v982, %v983
      %v1328 = vmax.f32 %v1326, %v1327
      %s1329 = scalar_lea.vmem [#allocation10], 192
      %v1330 = vld [vmem:[%s1329] sm:$0xf]
      %v1331 = vld [vmem:[%s1329 + $0x4] sm:$0xf]
      %v1332 = vld [vmem:[%s1329 + $0x8] sm:$0xf]
      %v1333 = vld [vmem:[%s1329 + $0xc] sm:$0xf]
      %v1334 = vld [vmem:[%s1329 + $0x10] sm:$0xf]
      %v1335 = vld [vmem:[%s1329 + $0x14] sm:$0xf]
      %v1336 = vld [vmem:[%s1329 + $0x18] sm:$0xf]
      %v1337 = vld [vmem:[%s1329 + $0x1c] sm:$0xf]
      %v1338 = vld [vmem:[%s1329 + $0x20] sm:$0xf]
      %v1339 = vld [vmem:[%s1329 + $0x24] sm:$0xf]
      %v1340 = vld [vmem:[%s1329 + $0x28] sm:$0xf]
      %v1341 = vld [vmem:[%s1329 + $0x2c] sm:$0xf]
      %v1342 = vld [vmem:[%s1329 + $0x30] sm:$0xf]
      %v1343 = vld [vmem:[%s1329 + $0x34] sm:$0xf]
      %v1344 = vld [vmem:[%s1329 + $0x38] sm:$0xf]
      %v1345 = vld [vmem:[%s1329 + $0x3c] sm:$0xf]
      %v1346 = vpack.c.bf16 %v1325, %v1325
      %s1347 = scalar_lea.vmem [#allocation10], 256
      %v1348 = vld [vmem:[%s1347] sm:$0xf]
      %v1349 = vld [vmem:[%s1347 + $0x4] sm:$0xf]
      %v1350 = vld [vmem:[%s1347 + $0x8] sm:$0xf]
      %v1351 = vld [vmem:[%s1347 + $0xc] sm:$0xf]
      %v1352 = vld [vmem:[%s1347 + $0x10] sm:$0xf]
      %v1353 = vld [vmem:[%s1347 + $0x14] sm:$0xf]
      %v1354 = vld [vmem:[%s1347 + $0x18] sm:$0xf]
      %v1355 = vld [vmem:[%s1347 + $0x1c] sm:$0xf]
      %v1356 = vld [vmem:[%s1347 + $0x20] sm:$0xf]
      %v1357 = vld [vmem:[%s1347 + $0x24] sm:$0xf]
      %v1358 = vld [vmem:[%s1347 + $0x28] sm:$0xf]
      %v1359 = vld [vmem:[%s1347 + $0x2c] sm:$0xf]
      %v1360 = vld [vmem:[%s1347 + $0x30] sm:$0xf]
      %v1361 = vld [vmem:[%s1347 + $0x34] sm:$0xf]
      %v1362 = vld [vmem:[%s1347 + $0x38] sm:$0xf]
      %v1363 = vld [vmem:[%s1347 + $0x3c] sm:$0xf]
      %v1364 = vpack.c.bf16 %v1328, %v1328
      %v1381 = vunpack.c.l.b16 %v1348
      %v1382 = vunpack.c.l.b16 %v1349
      %v1383 = vunpack.c.l.b16 %v1350
      %v1384 = vunpack.c.l.b16 %v1351
      %v1385 = vunpack.c.l.b16 %v1352
      %v1386 = vunpack.c.l.b16 %v1353
      %v1387 = vunpack.c.l.b16 %v1354
      %v1388 = vunpack.c.l.b16 %v1355
      %v1389 = vunpack.c.l.b16 %v1356
      %v1390 = vunpack.c.l.b16 %v1357
      %v1391 = vunpack.c.l.b16 %v1358
      %v1392 = vunpack.c.l.b16 %v1359
      %v1393 = vunpack.c.l.b16 %v1360
      %v1394 = vunpack.c.l.b16 %v1361
      %v1395 = vunpack.c.l.b16 %v1362
      %v1396 = vunpack.c.l.b16 %v1363
      %v1397 = vpack.c.b16 %v1382, %v1381
      %v1398 = vpack.c.b16 %v1384, %v1383
      %v1399 = vpack.c.b16 %v1386, %v1385
      %v1400 = vpack.c.b16 %v1388, %v1387
      %v1401 = vpack.c.b16 %v1390, %v1389
      %v1402 = vpack.c.b16 %v1392, %v1391
      %v1403 = vpack.c.b16 %v1394, %v1393
      %v1404 = vpack.c.b16 %v1396, %v1395
      %1413 = vmatprep.subr.bf16.mxu0 0
      %1414 = vmatpush1.bf16.msra.mxu0 %v1397
      %1415 = vmatprep.subr.bf16.mxu0 0
      %1416 = vmatpush1.bf16.msra.mxu0 %v1398
      %1417 = vmatprep.subr.bf16.mxu0 0
      %1418 = vmatpush1.bf16.msra.mxu0 %v1399
      %1419 = vmatprep.subr.bf16.mxu0 0
      %1420 = vmatpush1.bf16.msra.mxu0 %v1400
      %1421 = vmatprep.subr.bf16.mxu0 0
      %1422 = vmatpush1.bf16.msra.mxu0 %v1401
      %1423 = vmatprep.subr.bf16.mxu0 0
      %1424 = vmatpush1.bf16.msra.mxu0 %v1402
      %1425 = vmatprep.subr.bf16.mxu0 0
      %1426 = vmatpush1.bf16.msra.mxu0 %v1403
      %1427 = vmatprep.subr.bf16.mxu0 0
      %1428 = vmatpush1.bf16.msra.mxu0 %v1404
      %1429 = vmatprep.subr.bf16.mxu0 0
      %1430 = vmatpush1.bf16.msra.mxu0 0
      %1431 = vmatprep.subr.bf16.mxu0 0
      %1432 = vmatpush1.bf16.msra.mxu0 0
      %1433 = vmatprep.subr.bf16.mxu0 0
      %1434 = vmatpush1.bf16.msra.mxu0 0
      %1435 = vmatprep.subr.bf16.mxu0 0
      %1436 = vmatpush1.bf16.msra.mxu0 0
      %1437 = vmatprep.subr.bf16.mxu0 0
      %1438 = vmatpush1.bf16.msra.mxu0 0
      %1439 = vmatprep.subr.bf16.mxu0 0
      %1440 = vmatpush1.bf16.msra.mxu0 0
      %1441 = vmatprep.subr.bf16.mxu0 0
      %1442 = vmatpush1.bf16.msra.mxu0 0
      %1443 = vmatprep.subr.bf16.mxu0 0
      %1444 = vmatpush1.bf16.msra.mxu0 0
      %1445 = vmatprep.mubr.bf16.mxu0 0
      %1446 = vmatmul.mubr.bf16.gmra.mrb[0].mxu0 %v1364
      %v1447 = vpop.f32.mrb[0].mxu0
      %v1448 = vadd.f32 0.0, %v1447
      %v1449 = vpop.f32.mrb[0].mxu0
      %v1450 = vpop.f32.mrb[0].mxu0
      %v1451 = vpop.f32.mrb[0].mxu0
      %1452 = vdwg.mxu0
      %v1469 = vunpack.c.l.b16 %v1330
      %v1470 = vunpack.c.l.b16 %v1331
      %v1471 = vunpack.c.l.b16 %v1332
      %v1472 = vunpack.c.l.b16 %v1333
      %v1473 = vunpack.c.l.b16 %v1334
      %v1474 = vunpack.c.l.b16 %v1335
      %v1475 = vunpack.c.l.b16 %v1336
      %v1476 = vunpack.c.l.b16 %v1337
      %v1477 = vunpack.c.l.b16 %v1338
      %v1478 = vunpack.c.l.b16 %v1339
      %v1479 = vunpack.c.l.b16 %v1340
      %v1480 = vunpack.c.l.b16 %v1341
      %v1481 = vunpack.c.l.b16 %v1342
      %v1482 = vunpack.c.l.b16 %v1343
      %v1483 = vunpack.c.l.b16 %v1344
      %v1484 = vunpack.c.l.b16 %v1345
      %v1485 = vpack.c.b16 %v1470, %v1469
      %v1486 = vpack.c.b16 %v1472, %v1471
      %v1487 = vpack.c.b16 %v1474, %v1473
      %v1488 = vpack.c.b16 %v1476, %v1475
      %v1489 = vpack.c.b16 %v1478, %v1477
      %v1490 = vpack.c.b16 %v1480, %v1479
      %v1491 = vpack.c.b16 %v1482, %v1481
      %v1492 = vpack.c.b16 %v1484, %v1483
      %1501 = vmatprep.subr.bf16.mxu0 0
      %1502 = vmatpush1.bf16.msra.mxu0 %v1485
      %1503 = vmatprep.subr.bf16.mxu0 0
      %1504 = vmatpush1.bf16.msra.mxu0 %v1486
      %1505 = vmatprep.subr.bf16.mxu0 0
      %1506 = vmatpush1.bf16.msra.mxu0 %v1487
      %1507 = vmatprep.subr.bf16.mxu0 0
      %1508 = vmatpush1.bf16.msra.mxu0 %v1488
      %1509 = vmatprep.subr.bf16.mxu0 0
      %1510 = vmatpush1.bf16.msra.mxu0 %v1489
      %1511 = vmatprep.subr.bf16.mxu0 0
      %1512 = vmatpush1.bf16.msra.mxu0 %v1490
      %1513 = vmatprep.subr.bf16.mxu0 0
      %1514 = vmatpush1.bf16.msra.mxu0 %v1491
      %1515 = vmatprep.subr.bf16.mxu0 0
      %1516 = vmatpush1.bf16.msra.mxu0 %v1492
      %1517 = vmatprep.subr.bf16.mxu0 0
      %1518 = vmatpush1.bf16.msra.mxu0 0
      %1519 = vmatprep.subr.bf16.mxu0 0
      %1520 = vmatpush1.bf16.msra.mxu0 0
      %1521 = vmatprep.subr.bf16.mxu0 0
      %1522 = vmatpush1.bf16.msra.mxu0 0
      %1523 = vmatprep.subr.bf16.mxu0 0
      %1524 = vmatpush1.bf16.msra.mxu0 0
      %1525 = vmatprep.subr.bf16.mxu0 0
      %1526 = vmatpush1.bf16.msra.mxu0 0
      %1527 = vmatprep.subr.bf16.mxu0 0
      %1528 = vmatpush1.bf16.msra.mxu0 0
      %1529 = vmatprep.subr.bf16.mxu0 0
      %1530 = vmatpush1.bf16.msra.mxu0 0
      %1531 = vmatprep.subr.bf16.mxu0 0
      %1532 = vmatpush1.bf16.msra.mxu0 0
      %1533 = vmatprep.mubr.bf16.mxu0 0
      %1534 = vmatmul.mubr.bf16.gmra.mrb[0].mxu0 %v1346
      %v1535 = vpop.f32.mrb[0].mxu0
      %v1536 = vadd.f32 %v1448, %v1535
      %v1537 = vpop.f32.mrb[0].mxu0
      %v1538 = vpop.f32.mrb[0].mxu0
      %v1539 = vpop.f32.mrb[0].mxu0
      %1540 = vdwg.mxu0
      %s1541 = scalar_lea.vmem %s5, 2
      %v1542 = vld [vmem:[%s1541] sm:$0x1]
      %v1544 = vlaneseq
      %v1545 = vshrl.u32 %v1544, 7
      %v1546 = vsub.s32 0, %v1545
      %v1547 = vrot.slane %v1542, %v1546
      %v1549 = vadd.f32 %v1536, %v1547
      %v1550 = vtanh.pop %v1549
      %v1551 = vld [vmem:[#allocation12] sm:$0xf]
      %v1552 = vld [vmem:[#allocation12 + $0x4] sm:$0xf]
      %v1553 = vld [vmem:[#allocation12 + $0x8] sm:$0xf]
      %v1554 = vld [vmem:[#allocation12 + $0xc] sm:$0xf]
      %v1555 = vld [vmem:[#allocation12 + $0x10] sm:$0xf]
      %v1556 = vld [vmem:[#allocation12 + $0x14] sm:$0xf]
      %v1557 = vld [vmem:[#allocation12 + $0x18] sm:$0xf]
      %v1558 = vld [vmem:[#allocation12 + $0x1c] sm:$0xf]
      %v1559 = vld [vmem:[#allocation12 + $0x20] sm:$0xf]
      %v1560 = vld [vmem:[#allocation12 + $0x24] sm:$0xf]
      %v1561 = vld [vmem:[#allocation12 + $0x28] sm:$0xf]
      %v1562 = vld [vmem:[#allocation12 + $0x2c] sm:$0xf]
      %v1563 = vld [vmem:[#allocation12 + $0x30] sm:$0xf]
      %v1564 = vld [vmem:[#allocation12 + $0x34] sm:$0xf]
      %v1565 = vld [vmem:[#allocation12 + $0x38] sm:$0xf]
      %v1566 = vld [vmem:[#allocation12 + $0x3c] sm:$0xf]
      %v1567 = vpack.c.bf16 %v1099, %v1099
      %s1568 = scalar_lea.vmem [#allocation12], 64
      %v1569 = vld [vmem:[%s1568] sm:$0xf]
      %v1570 = vld [vmem:[%s1568 + $0x4] sm:$0xf]
      %v1571 = vld [vmem:[%s1568 + $0x8] sm:$0xf]
      %v1572 = vld [vmem:[%s1568 + $0xc] sm:$0xf]
      %v1573 = vld [vmem:[%s1568 + $0x10] sm:$0xf]
      %v1574 = vld [vmem:[%s1568 + $0x14] sm:$0xf]
      %v1575 = vld [vmem:[%s1568 + $0x18] sm:$0xf]
      %v1576 = vld [vmem:[%s1568 + $0x1c] sm:$0xf]
      %v1577 = vld [vmem:[%s1568 + $0x20] sm:$0xf]
      %v1578 = vld [vmem:[%s1568 + $0x24] sm:$0xf]
      %v1579 = vld [vmem:[%s1568 + $0x28] sm:$0xf]
      %v1580 = vld [vmem:[%s1568 + $0x2c] sm:$0xf]
      %v1581 = vld [vmem:[%s1568 + $0x30] sm:$0xf]
      %v1582 = vld [vmem:[%s1568 + $0x34] sm:$0xf]
      %v1583 = vld [vmem:[%s1568 + $0x38] sm:$0xf]
      %v1584 = vld [vmem:[%s1568 + $0x3c] sm:$0xf]
      %v1585 = vpack.c.bf16 %v1321, %v1321
      %v1602 = vunpack.c.l.b16 %v1569
      %v1603 = vunpack.c.l.b16 %v1570
      %v1604 = vunpack.c.l.b16 %v1571
      %v1605 = vunpack.c.l.b16 %v1572
      %v1606 = vunpack.c.l.b16 %v1573
      %v1607 = vunpack.c.l.b16 %v1574
      %v1608 = vunpack.c.l.b16 %v1575
      %v1609 = vunpack.c.l.b16 %v1576
      %v1610 = vunpack.c.l.b16 %v1577
      %v1611 = vunpack.c.l.b16 %v1578
      %v1612 = vunpack.c.l.b16 %v1579
      %v1613 = vunpack.c.l.b16 %v1580
      %v1614 = vunpack.c.l.b16 %v1581
      %v1615 = vunpack.c.l.b16 %v1582
      %v1616 = vunpack.c.l.b16 %v1583
      %v1617 = vunpack.c.l.b16 %v1584
      %v1618 = vpack.c.b16 %v1603, %v1602
      %v1619 = vpack.c.b16 %v1605, %v1604
      %v1620 = vpack.c.b16 %v1607, %v1606
      %v1621 = vpack.c.b16 %v1609, %v1608
      %v1622 = vpack.c.b16 %v1611, %v1610
      %v1623 = vpack.c.b16 %v1613, %v1612
      %v1624 = vpack.c.b16 %v1615, %v1614
      %v1625 = vpack.c.b16 %v1617, %v1616
      %1634 = vmatprep.subr.bf16.mxu0 0
      %1635 = vmatpush1.bf16.msra.mxu0 %v1618
      %1636 = vmatprep.subr.bf16.mxu0 0
      %1637 = vmatpush1.bf16.msra.mxu0 %v1619
      %1638 = vmatprep.subr.bf16.mxu0 0
      %1639 = vmatpush1.bf16.msra.mxu0 %v1620
      %1640 = vmatprep.subr.bf16.mxu0 0
      %1641 = vmatpush1.bf16.msra.mxu0 %v1621
      %1642 = vmatprep.subr.bf16.mxu0 0
      %1643 = vmatpush1.bf16.msra.mxu0 %v1622
      %1644 = vmatprep.subr.bf16.mxu0 0
      %1645 = vmatpush1.bf16.msra.mxu0 %v1623
      %1646 = vmatprep.subr.bf16.mxu0 0
      %1647 = vmatpush1.bf16.msra.mxu0 %v1624
      %1648 = vmatprep.subr.bf16.mxu0 0
      %1649 = vmatpush1.bf16.msra.mxu0 %v1625
      %1650 = vmatprep.subr.bf16.mxu0 0
      %1651 = vmatpush1.bf16.msra.mxu0 0
      %1652 = vmatprep.subr.bf16.mxu0 0
      %1653 = vmatpush1.bf16.msra.mxu0 0
      %1654 = vmatprep.subr.bf16.mxu0 0
      %1655 = vmatpush1.bf16.msra.mxu0 0
      %1656 = vmatprep.subr.bf16.mxu0 0
      %1657 = vmatpush1.bf16.msra.mxu0 0
      %1658 = vmatprep.subr.bf16.mxu0 0
      %1659 = vmatpush1.bf16.msra.mxu0 0
      %1660 = vmatprep.subr.bf16.mxu0 0
      %1661 = vmatpush1.bf16.msra.mxu0 0
      %1662 = vmatprep.subr.bf16.mxu0 0
      %1663 = vmatpush1.bf16.msra.mxu0 0
      %1664 = vmatprep.subr.bf16.mxu0 0
      %1665 = vmatpush1.bf16.msra.mxu0 0
      %1666 = vmatprep.mubr.bf16.mxu0 0
      %1667 = vmatmul.mubr.bf16.gmra.mrb[0].mxu0 %v1585
      %v1668 = vpop.f32.mrb[0].mxu0
      %v1669 = vadd.f32 0.0, %v1668
      %v1670 = vpop.f32.mrb[0].mxu0
      %v1671 = vpop.f32.mrb[0].mxu0
      %v1672 = vpop.f32.mrb[0].mxu0
      %1673 = vdwg.mxu0
      %v1690 = vunpack.c.l.b16 %v1551
      %v1691 = vunpack.c.l.b16 %v1552
      %v1692 = vunpack.c.l.b16 %v1553
      %v1693 = vunpack.c.l.b16 %v1554
      %v1694 = vunpack.c.l.b16 %v1555
      %v1695 = vunpack.c.l.b16 %v1556
      %v1696 = vunpack.c.l.b16 %v1557
      %v1697 = vunpack.c.l.b16 %v1558
      %v1698 = vunpack.c.l.b16 %v1559
      %v1699 = vunpack.c.l.b16 %v1560
      %v1700 = vunpack.c.l.b16 %v1561
      %v1701 = vunpack.c.l.b16 %v1562
      %v1702 = vunpack.c.l.b16 %v1563
      %v1703 = vunpack.c.l.b16 %v1564
      %v1704 = vunpack.c.l.b16 %v1565
      %v1705 = vunpack.c.l.b16 %v1566
      %v1706 = vpack.c.b16 %v1691, %v1690
      %v1707 = vpack.c.b16 %v1693, %v1692
      %v1708 = vpack.c.b16 %v1695, %v1694
      %v1709 = vpack.c.b16 %v1697, %v1696
      %v1710 = vpack.c.b16 %v1699, %v1698
      %v1711 = vpack.c.b16 %v1701, %v1700
      %v1712 = vpack.c.b16 %v1703, %v1702
      %v1713 = vpack.c.b16 %v1705, %v1704
      %1722 = vmatprep.subr.bf16.mxu0 0
      %1723 = vmatpush1.bf16.msra.mxu0 %v1706
      %1724 = vmatprep.subr.bf16.mxu0 0
      %1725 = vmatpush1.bf16.msra.mxu0 %v1707
      %1726 = vmatprep.subr.bf16.mxu0 0
      %1727 = vmatpush1.bf16.msra.mxu0 %v1708
      %1728 = vmatprep.subr.bf16.mxu0 0
      %1729 = vmatpush1.bf16.msra.mxu0 %v1709
      %1730 = vmatprep.subr.bf16.mxu0 0
      %1731 = vmatpush1.bf16.msra.mxu0 %v1710
      %1732 = vmatprep.subr.bf16.mxu0 0
      %1733 = vmatpush1.bf16.msra.mxu0 %v1711
      %1734 = vmatprep.subr.bf16.mxu0 0
      %1735 = vmatpush1.bf16.msra.mxu0 %v1712
      %1736 = vmatprep.subr.bf16.mxu0 0
      %1737 = vmatpush1.bf16.msra.mxu0 %v1713
      %1738 = vmatprep.subr.bf16.mxu0 0
      %1739 = vmatpush1.bf16.msra.mxu0 0
      %1740 = vmatprep.subr.bf16.mxu0 0
      %1741 = vmatpush1.bf16.msra.mxu0 0
      %1742 = vmatprep.subr.bf16.mxu0 0
      %1743 = vmatpush1.bf16.msra.mxu0 0
      %1744 = vmatprep.subr.bf16.mxu0 0
      %1745 = vmatpush1.bf16.msra.mxu0 0
      %1746 = vmatprep.subr.bf16.mxu0 0
      %1747 = vmatpush1.bf16.msra.mxu0 0
      %1748 = vmatprep.subr.bf16.mxu0 0
      %1749 = vmatpush1.bf16.msra.mxu0 0
      %1750 = vmatprep.subr.bf16.mxu0 0
      %1751 = vmatpush1.bf16.msra.mxu0 0
      %1752 = vmatprep.subr.bf16.mxu0 0
      %1753 = vmatpush1.bf16.msra.mxu0 0
      %1754 = vmatprep.mubr.bf16.mxu0 0
      %1755 = vmatmul.mubr.bf16.gmra.mrb[0].mxu0 %v1567
      %v1756 = vpop.f32.mrb[0].mxu0
      %v1757 = vadd.f32 %v1669, %v1756
      %v1758 = vpop.f32.mrb[0].mxu0
      %v1759 = vpop.f32.mrb[0].mxu0
      %v1760 = vpop.f32.mrb[0].mxu0
      %1761 = vdwg.mxu0
      %s1762 = scalar_lea.vmem [#allocation12], 128
      %v1763 = vld [vmem:[%s1762] sm:$0xf]
      %v1764 = vld [vmem:[%s1762 + $0x4] sm:$0xf]
      %v1765 = vld [vmem:[%s1762 + $0x8] sm:$0xf]
      %v1766 = vld [vmem:[%s1762 + $0xc] sm:$0xf]
      %v1767 = vld [vmem:[%s1762 + $0x10] sm:$0xf]
      %v1768 = vld [vmem:[%s1762 + $0x14] sm:$0xf]
      %v1769 = vld [vmem:[%s1762 + $0x18] sm:$0xf]
      %v1770 = vld [vmem:[%s1762 + $0x1c] sm:$0xf]
      %v1771 = vld [vmem:[%s1762 + $0x20] sm:$0xf]
      %v1772 = vld [vmem:[%s1762 + $0x24] sm:$0xf]
      %v1773 = vld [vmem:[%s1762 + $0x28] sm:$0xf]
      %v1774 = vld [vmem:[%s1762 + $0x2c] sm:$0xf]
      %v1775 = vld [vmem:[%s1762 + $0x30] sm:$0xf]
      %v1776 = vld [vmem:[%s1762 + $0x34] sm:$0xf]
      %v1777 = vld [vmem:[%s1762 + $0x38] sm:$0xf]
      %v1778 = vld [vmem:[%s1762 + $0x3c] sm:$0xf]
      %v1779 = vpack.c.bf16 %v1550, %v1550
      %v1796 = vunpack.c.l.b16 %v1763
      %v1797 = vunpack.c.l.b16 %v1764
      %v1798 = vunpack.c.l.b16 %v1765
      %v1799 = vunpack.c.l.b16 %v1766
      %v1800 = vunpack.c.l.b16 %v1767
      %v1801 = vunpack.c.l.b16 %v1768
      %v1802 = vunpack.c.l.b16 %v1769
      %v1803 = vunpack.c.l.b16 %v1770
      %v1804 = vunpack.c.l.b16 %v1771
      %v1805 = vunpack.c.l.b16 %v1772
      %v1806 = vunpack.c.l.b16 %v1773
      %v1807 = vunpack.c.l.b16 %v1774
      %v1808 = vunpack.c.l.b16 %v1775
      %v1809 = vunpack.c.l.b16 %v1776
      %v1810 = vunpack.c.l.b16 %v1777
      %v1811 = vunpack.c.l.b16 %v1778
      %v1812 = vpack.c.b16 %v1797, %v1796
      %v1813 = vpack.c.b16 %v1799, %v1798
      %v1814 = vpack.c.b16 %v1801, %v1800
      %v1815 = vpack.c.b16 %v1803, %v1802
      %v1816 = vpack.c.b16 %v1805, %v1804
      %v1817 = vpack.c.b16 %v1807, %v1806
      %v1818 = vpack.c.b16 %v1809, %v1808
      %v1819 = vpack.c.b16 %v1811, %v1810
      %1828 = vmatprep.subr.bf16.mxu0 0
      %1829 = vmatpush1.bf16.msra.mxu0 %v1812
      %1830 = vmatprep.subr.bf16.mxu0 0
      %1831 = vmatpush1.bf16.msra.mxu0 %v1813
      %1832 = vmatprep.subr.bf16.mxu0 0
      %1833 = vmatpush1.bf16.msra.mxu0 %v1814
      %1834 = vmatprep.subr.bf16.mxu0 0
      %1835 = vmatpush1.bf16.msra.mxu0 %v1815
      %1836 = vmatprep.subr.bf16.mxu0 0
      %1837 = vmatpush1.bf16.msra.mxu0 %v1816
      %1838 = vmatprep.subr.bf16.mxu0 0
      %1839 = vmatpush1.bf16.msra.mxu0 %v1817
      %1840 = vmatprep.subr.bf16.mxu0 0
      %1841 = vmatpush1.bf16.msra.mxu0 %v1818
      %1842 = vmatprep.subr.bf16.mxu0 0
      %1843 = vmatpush1.bf16.msra.mxu0 %v1819
      %1844 = vmatprep.subr.bf16.mxu0 0
      %1845 = vmatpush1.bf16.msra.mxu0 0
      %1846 = vmatprep.subr.bf16.mxu0 0
      %1847 = vmatpush1.bf16.msra.mxu0 0
      %1848 = vmatprep.subr.bf16.mxu0 0
      %1849 = vmatpush1.bf16.msra.mxu0 0
      %1850 = vmatprep.subr.bf16.mxu0 0
      %1851 = vmatpush1.bf16.msra.mxu0 0
      %1852 = vmatprep.subr.bf16.mxu0 0
      %1853 = vmatpush1.bf16.msra.mxu0 0
      %1854 = vmatprep.subr.bf16.mxu0 0
      %1855 = vmatpush1.bf16.msra.mxu0 0
      %1856 = vmatprep.subr.bf16.mxu0 0
      %1857 = vmatpush1.bf16.msra.mxu0 0
      %1858 = vmatprep.subr.bf16.mxu0 0
      %1859 = vmatpush1.bf16.msra.mxu0 0
      %1860 = vmatprep.mubr.bf16.mxu0 0
      %1861 = vmatmul.mubr.bf16.gmra.mrb[0].mxu0 %v1779
      %v1862 = vpop.f32.mrb[0].mxu0
      %v1863 = vadd.f32 0.0, %v1862
      %v1864 = vpop.f32.mrb[0].mxu0
      %v1865 = vpop.f32.mrb[0].mxu0
      %v1866 = vpop.f32.mrb[0].mxu0
      %1867 = vdwg.mxu0
      %v1868 = vadd.f32 %v1757, %v1863
      %v1869 = vld [vmem:[%s6] sm:$0x1]
      %v1871 = vlaneseq
      %v1872 = vshrl.u32 %v1871, 7
      %v1873 = vsub.s32 0, %v1872
      %v1874 = vrot.slane %v1869, %v1873
      %v1876 = vadd.f32 %v1868, %v1874
      %1877 = vst [vmem:[#allocation13] sm:$0xff] %v1876
    $region57: #{tpu_custom_call.1} parent=1 // pred_fallthru
      _
    // Predicated region
    $region58: #{tpu_custom_call.1} parent=1 // pred_check
      _
    $region59: #{tpu_custom_call.1} parent=1 // pred_check_branch
      %1879 = sbr.rel (0) target = $region61
    $region60: #{tpu_custom_call.1} parent=1 // pred_region
      %s1881 = ssub.s32 128, 128
      %1882 = vsyncadd [#allocation6], %s1881
      %s1884 = sshll.u32 [#allocation13], 4
      %s1885 = int_to_ptr.vmem [resolvable:$true] %s1884
      %1887 = dma.vmem_to_hbm [thread:$0]  %s1885, 128, %s7, [#allocation6]
    $region61: #{tpu_custom_call.1} parent=1 // pred_fallthru
      _
    // Predicated region
    $region62: #{tpu_custom_call.1} parent=1 // pred_check
      _
    $region63: #{tpu_custom_call.1} parent=1 // pred_check_branch
      %1889 = sbr.rel (0) target = $region65
    $region64: #{tpu_custom_call.1} parent=1 // pred_region
      %1890 = dma.done [#allocation6], 128
    $region65: #{tpu_custom_call.1} parent=1 // pred_fallthru
      _
    %1891 = vsyncpa [#allocation5], 1
    %1892 = vsyncpa [#allocation8], 1
    %1893 = vsyncpa [#allocation11], 1
    %1894 = vsyncpa [#allocation6], 1

</llo_original>
